<compile_context>
chip_gen: v7x
topology: tpu7x:2x2x1
jax: 0.10.0
libtpu: 0.0.40
codegen_flags: <defaults>
</compile_context>

<pallas_src>
import functools

import jax
import jax.numpy as jnp
import numpy as np
from jax.experimental import pallas as pl
from jax.experimental.pallas import tpu as pltpu


def _spatial_attention_kernel(w_ref, b_ref, xmask_ref, ymask_ref, x_ref, o_ref,
                              *, H, W, K, c_chunk):
    # w_ref:     SMEM (2*K*K,) f32  conv weight flattened as (in_ch, kh, kw)
    # b_ref:     SMEM (1,)     f32  conv bias
    # xmask_ref: VMEM (K, H*W) f32  1.0 where column x + (kx - K//2) is in range
    # ymask_ref: VMEM (K, H*W) f32  1.0 where row    y + (ky - K//2) is in range
    # x_ref:     VMEM (Bt, C, H*W)  input (spatial dims flattened onto lanes)
    # o_ref:     VMEM (Bt, C, H*W)  output
    Bt, C, HW = x_ref.shape
    P = K // 2
    f32 = jnp.float32

    # ---- Channel pooling (mean & max over C), streamed over C chunks. ----
    sum_acc = jnp.zeros((Bt, HW), f32)
    max_acc = jnp.full((Bt, HW), -jnp.inf, f32)
    for c0 in range(0, C, c_chunk):
        cc = min(c_chunk, C - c0)
        xc = x_ref[:, c0:c0 + cc, :].astype(f32)            # (Bt, cc, HW)
        sum_acc = sum_acc + jnp.sum(xc, axis=1)
        max_acc = jnp.maximum(max_acc, jnp.max(xc, axis=1))
    avg_pool = sum_acc * (1.0 / C)                           # (Bt, HW)
    max_pool = max_acc                                       # (Bt, HW)

    # ---- 7x7 conv (2 -> 1 channel) on register-resident planes.
    # Factorized: hoist the 7 lane (kx) shifts per pooled channel, reuse them
    # across all 7 ky rows; the ky shift is a single lane roll by ky*W per row.
    # pltpu.roll follows np.roll semantics: out[i] = in[(i - shift) % n], so a
    # tap offset d (out[i] <- in[i + d], zero outside) uses shift = (-d) % HW
    # followed by the precomputed border mask.
    shifted = []                                             # [(avg_dx, max_dx)]
    for kx in range(K):
        dx = kx - P
        if dx == 0:
            shifted.append((avg_pool, max_pool))
        else:
            xm = xmask_ref[kx:kx + 1, :]                     # (1, HW) bcast
            s = (-dx) % HW
            sa = pltpu.roll(avg_pool, shift=s, axis=1) * xm
            sm = pltpu.roll(max_pool, shift=s, axis=1) * xm
            shifted.append((sa, sm))

    acc = jnp.full((Bt, HW), b_ref[0], f32)
    for ky in range(K):
        dy = ky - P
        # Weighted sum over (pooled channel, kx) for this kernel row: VALU work.
        r = jnp.zeros((Bt, HW), f32)
        for kx in range(K):
            sa, sm = shifted[kx]
            r = r + w_ref[ky * K + kx] * sa                  # in-channel 0: avg
            r = r + w_ref[K * K + ky * K + kx] * sm          # in-channel 1: max
        if dy == 0:
            acc = acc + r
        else:
            ym = ymask_ref[ky:ky + 1, :]                     # (1, HW) bcast
            acc = acc + pltpu.roll(r, shift=(-dy * W) % HW, axis=1) * ym

    attn = jax.nn.sigmoid(acc)                               # (Bt, HW)

    # ---- Apply attention, streaming over C again (bounded vreg pressure). ----
    for c0 in range(0, C, c_chunk):
        cc = min(c_chunk, C - c0)
        xc = x_ref[:, c0:c0 + cc, :].astype(f32)
        o_ref[:, c0:c0 + cc, :] = (xc * attn[:, None, :]).astype(o_ref.dtype)


def _border_masks(H, W, K):
    """{0,1} masks of shape (K, H*W) marking in-range columns / rows per tap."""
    P = K // 2
    cols = np.arange(H * W, dtype=np.int64) % W
    rows = np.arange(H * W, dtype=np.int64) // W
    xmask = np.stack([((cols + kx - P) >= 0) & ((cols + kx - P) < W)
                      for kx in range(K)]).astype(np.float32)
    ymask = np.stack([((rows + ky - P) >= 0) & ((rows + ky - P) < H)
                      for ky in range(K)]).astype(np.float32)
    return jnp.asarray(xmask), jnp.asarray(ymask)


def spatial_attention(x, weight, bias, *, batch_block=None, c_chunk=8):
    """x: (B, C, H, W); weight: (1, 2, 7, 7); bias: (1,)."""
    B, C, H, W = x.shape
    K = weight.shape[-1]
    HW = H * W
    Bt = B if batch_block is None else batch_block
    assert B % Bt == 0, "batch_block must divide B"

    x2 = x.reshape(B, C, HW)                          # lane-dense view (free)
    w_flat = weight.reshape(-1).astype(jnp.float32)   # (2*K*K,)
    b_flat = bias.reshape(-1).astype(jnp.float32)     # (1,)
    xmask, ymask = _border_masks(H, W, K)             # (K, HW) each

    kernel = functools.partial(_spatial_attention_kernel,
                               H=H, W=W, K=K, c_chunk=c_chunk)

    out2 = pl.pallas_call(
        kernel,
        out_shape=jax.ShapeDtypeStruct((B, C, HW), x.dtype),
        grid=(B // Bt,),
        in_specs=[
            pl.BlockSpec(memory_space=pltpu.MemorySpace.SMEM),   # conv taps
            pl.BlockSpec(memory_space=pltpu.MemorySpace.SMEM),   # conv bias
            pl.BlockSpec((K, HW), lambda b: (0, 0)),             # x border mask
            pl.BlockSpec((K, HW), lambda b: (0, 0)),             # y border mask
            pl.BlockSpec((Bt, C, HW), lambda b: (b, 0, 0)),      # x
        ],
        out_specs=pl.BlockSpec((Bt, C, HW), lambda b: (b, 0, 0)),
        compiler_params=pltpu.CompilerParams(
            # Batch axis is embarrassingly parallel -> shard across the two
            # TensorCores on v7x; harmless/no-op on single-TC v5e/v6e.
            dimension_semantics=("parallel",),
            # NOTE: for production C/H/W, additionally tile over C (or H with a
            # 3-row halo) and set vmem_limit_bytes so the double-buffered
            # (Bt, C, H*W) blocks fit v7x's 64 MiB / v5e's 16 MiB scoped VMEM.
        ),
    )(w_flat, b_flat, xmask, ymask, x2)
    return out2.reshape(B, C, H, W)


def spatial_attention_ref(x, weight, bias):
    """Pure-JAX reference (matches the PyTorch forward)."""
    avg_pool = jnp.mean(x, axis=1, keepdims=True)
    max_pool = jnp.max(x, axis=1, keepdims=True)
    attn_in = jnp.concatenate([avg_pool, max_pool], axis=1)
    conv = jax.lax.conv_general_dilated(
        attn_in, weight, window_strides=(1, 1), padding=[(3, 3), (3, 3)],
        dimension_numbers=("NCHW", "OIHW", "NCHW")) + bias.reshape(1, 1, 1, 1)
    return x * jax.nn.sigmoid(conv)


if __name__ == "__main__":
    key = jax.random.PRNGKey(0)
    kx, kw, kb = jax.random.split(key, 3)

    B, C, H, W = 2, 4, 16, 16
    x = jax.random.normal(kx, (B, C, H, W), dtype=jnp.float32)

    # Deterministic synthetic Conv2d(2, 1, kernel_size=7, padding=3) params.
    weight = 0.1 * jax.random.normal(kw, (1, 2, 7, 7), dtype=jnp.float32)
    bias = 0.1 * jax.random.normal(kb, (1,), dtype=jnp.float32)

    out = spatial_attention(x, weight, bias)
    out = jax.block_until_ready(out)

    ref = spatial_attention_ref(x, weight, bias)
    np.testing.assert_allclose(np.asarray(out), np.asarray(ref),
                               rtol=1e-5, atol=1e-5)
    print("KERNEL_OK")
</pallas_src>

<mosaic_0001>
module attributes {stable_mosaic.version = 11 : i64} {
  func.func @_spatial_attention_kernel(%arg0: i32, %arg1: memref<98xf32, #tpu.memory_space<smem>>, %arg2: memref<1xf32, #tpu.memory_space<smem>>, %arg3: memref<7x256xf32, #tpu.memory_space<vmem>>, %arg4: memref<7x256xf32, #tpu.memory_space<vmem>>, %arg5: memref<2x4x256xf32, #tpu.memory_space<vmem>>, %arg6: memref<2x4x256xf32, #tpu.memory_space<vmem>>) attributes {dimension_semantics = [#tpu.dimension_semantics<parallel>], iteration_bounds = array<i64: 1>, scalar_prefetch = 0 : i64, scratch_operands = 0 : i64, tpu.core_type = #tpu.core_type<tc>, window_params = [{transform_indices = @transform_0, window_bounds = array<i64: 98>}, {transform_indices = @transform_1, window_bounds = array<i64: 1>}, {pipeline_mode = #tpu.pipeline_mode<synchronous>, transform_indices = @transform_2, window_bounds = array<i64: 7, 256>}, {pipeline_mode = #tpu.pipeline_mode<synchronous>, transform_indices = @transform_3, window_bounds = array<i64: 7, 256>}, {transform_indices = @transform_4, window_bounds = array<i64: 2, 4, 256>}, {transform_indices = @transform_5, window_bounds = array<i64: 2, 4, 256>}]} {
    %cst = arith.constant 0.000000e+00 : f32
    %0 = vector.broadcast %cst : f32 to vector<2x256xf32>
    %cst_0 = arith.constant 0xFF800000 : f32
    %1 = vector.broadcast %cst_0 : f32 to vector<2x256xf32>
    %c0 = arith.constant 0 : index
    %c0_1 = arith.constant 0 : index
    %c0_2 = arith.constant 0 : index
    %2 = vector.load %arg5[%c0, %c0_1, %c0_2] : memref<2x4x256xf32, #tpu.memory_space<vmem>>, vector<2x4x256xf32>
    %cst_3 = arith.constant dense<0.000000e+00> : vector<2x256xf32>
    %3 = vector.multi_reduction <add>, %2, %cst_3 [1] : vector<2x4x256xf32> to vector<2x256xf32>
    %4 = arith.addf %0, %3 : vector<2x256xf32>
    %cst_4 = arith.constant dense<0xFF800000> : vector<2x256xf32>
    %5 = vector.multi_reduction <maximumf>, %2, %cst_4 [1] : vector<2x4x256xf32> to vector<2x256xf32>
    %6 = arith.maximumf %1, %5 : vector<2x256xf32>
    %cst_5 = arith.constant 2.500000e-01 : f32
    %7 = vector.broadcast %cst_5 : f32 to vector<2x256xf32>
    %8 = arith.mulf %4, %7 : vector<2x256xf32>
    %c0_6 = arith.constant 0 : index
    %c0_7 = arith.constant 0 : index
    %9 = vector.load %arg3[%c0_6, %c0_7] : memref<7x256xf32, #tpu.memory_space<vmem>>, vector<1x256xf32>
    %c3_i32 = arith.constant 3 : i32
    %10 = tpu.dynamic_rotate %8 by %c3_i32 dim 1 : vector<2x256xf32>, i32 -> vector<2x256xf32>
    %11 = vector.broadcast %9 : vector<1x256xf32> to vector<2x256xf32>
    %12 = arith.mulf %10, %11 : vector<2x256xf32>
    %c3_i32_8 = arith.constant 3 : i32
    %13 = tpu.dynamic_rotate %6 by %c3_i32_8 dim 1 : vector<2x256xf32>, i32 -> vector<2x256xf32>
    %14 = vector.broadcast %9 : vector<1x256xf32> to vector<2x256xf32>
    %15 = arith.mulf %13, %14 : vector<2x256xf32>
    %c1 = arith.constant 1 : index
    %c0_9 = arith.constant 0 : index
    %16 = vector.load %arg3[%c1, %c0_9] : memref<7x256xf32, #tpu.memory_space<vmem>>, vector<1x256xf32>
    %c2_i32 = arith.constant 2 : i32
    %17 = tpu.dynamic_rotate %8 by %c2_i32 dim 1 : vector<2x256xf32>, i32 -> vector<2x256xf32>
    %18 = vector.broadcast %16 : vector<1x256xf32> to vector<2x256xf32>
    %19 = arith.mulf %17, %18 : vector<2x256xf32>
    %c2_i32_10 = arith.constant 2 : i32
    %20 = tpu.dynamic_rotate %6 by %c2_i32_10 dim 1 : vector<2x256xf32>, i32 -> vector<2x256xf32>
    %21 = vector.broadcast %16 : vector<1x256xf32> to vector<2x256xf32>
    %22 = arith.mulf %20, %21 : vector<2x256xf32>
    %c2 = arith.constant 2 : index
    %c0_11 = arith.constant 0 : index
    %23 = vector.load %arg3[%c2, %c0_11] : memref<7x256xf32, #tpu.memory_space<vmem>>, vector<1x256xf32>
    %c1_i32 = arith.constant 1 : i32
    %24 = tpu.dynamic_rotate %8 by %c1_i32 dim 1 : vector<2x256xf32>, i32 -> vector<2x256xf32>
    %25 = vector.broadcast %23 : vector<1x256xf32> to vector<2x256xf32>
    %26 = arith.mulf %24, %25 : vector<2x256xf32>
    %c1_i32_12 = arith.constant 1 : i32
    %27 = tpu.dynamic_rotate %6 by %c1_i32_12 dim 1 : vector<2x256xf32>, i32 -> vector<2x256xf32>
    %28 = vector.broadcast %23 : vector<1x256xf32> to vector<2x256xf32>
    %29 = arith.mulf %27, %28 : vector<2x256xf32>
    %c4 = arith.constant 4 : index
    %c0_13 = arith.constant 0 : index
    %30 = vector.load %arg3[%c4, %c0_13] : memref<7x256xf32, #tpu.memory_space<vmem>>, vector<1x256xf32>
    %c255_i32 = arith.constant 255 : i32
    %31 = tpu.dynamic_rotate %8 by %c255_i32 dim 1 : vector<2x256xf32>, i32 -> vector<2x256xf32>
    %32 = vector.broadcast %30 : vector<1x256xf32> to vector<2x256xf32>
    %33 = arith.mulf %31, %32 : vector<2x256xf32>
    %c255_i32_14 = arith.constant 255 : i32
    %34 = tpu.dynamic_rotate %6 by %c255_i32_14 dim 1 : vector<2x256xf32>, i32 -> vector<2x256xf32>
    %35 = vector.broadcast %30 : vector<1x256xf32> to vector<2x256xf32>
    %36 = arith.mulf %34, %35 : vector<2x256xf32>
    %c5 = arith.constant 5 : index
    %c0_15 = arith.constant 0 : index
    %37 = vector.load %arg3[%c5, %c0_15] : memref<7x256xf32, #tpu.memory_space<vmem>>, vector<1x256xf32>
    %c254_i32 = arith.constant 254 : i32
    %38 = tpu.dynamic_rotate %8 by %c254_i32 dim 1 : vector<2x256xf32>, i32 -> vector<2x256xf32>
    %39 = vector.broadcast %37 : vector<1x256xf32> to vector<2x256xf32>
    %40 = arith.mulf %38, %39 : vector<2x256xf32>
    %c254_i32_16 = arith.constant 254 : i32
    %41 = tpu.dynamic_rotate %6 by %c254_i32_16 dim 1 : vector<2x256xf32>, i32 -> vector<2x256xf32>
    %42 = vector.broadcast %37 : vector<1x256xf32> to vector<2x256xf32>
    %43 = arith.mulf %41, %42 : vector<2x256xf32>
    %c6 = arith.constant 6 : index
    %c0_17 = arith.constant 0 : index
    %44 = vector.load %arg3[%c6, %c0_17] : memref<7x256xf32, #tpu.memory_space<vmem>>, vector<1x256xf32>
    %c253_i32 = arith.constant 253 : i32
    %45 = tpu.dynamic_rotate %8 by %c253_i32 dim 1 : vector<2x256xf32>, i32 -> vector<2x256xf32>
    %46 = vector.broadcast %44 : vector<1x256xf32> to vector<2x256xf32>
    %47 = arith.mulf %45, %46 : vector<2x256xf32>
    %c253_i32_18 = arith.constant 253 : i32
    %48 = tpu.dynamic_rotate %6 by %c253_i32_18 dim 1 : vector<2x256xf32>, i32 -> vector<2x256xf32>
    %49 = vector.broadcast %44 : vector<1x256xf32> to vector<2x256xf32>
    %50 = arith.mulf %48, %49 : vector<2x256xf32>
    %c0_19 = arith.constant 0 : index
    %51 = memref.load %arg2[%c0_19] : memref<1xf32, #tpu.memory_space<smem>>
    %52 = vector.broadcast %51 : f32 to vector<2x256xf32>
    %cst_20 = arith.constant 0.000000e+00 : f32
    %53 = vector.broadcast %cst_20 : f32 to vector<2x256xf32>
    %c0_21 = arith.constant 0 : index
    %54 = memref.load %arg1[%c0_21] : memref<98xf32, #tpu.memory_space<smem>>
    %55 = vector.broadcast %54 : f32 to vector<2x256xf32>
    %56 = arith.mulf %55, %12 : vector<2x256xf32>
    %57 = arith.addf %53, %56 : vector<2x256xf32>
    %c49 = arith.constant 49 : index
    %58 = memref.load %arg1[%c49] : memref<98xf32, #tpu.memory_space<smem>>
    %59 = vector.broadcast %58 : f32 to vector<2x256xf32>
    %60 = arith.mulf %59, %15 : vector<2x256xf32>
    %61 = arith.addf %57, %60 : vector<2x256xf32>
    %c1_22 = arith.constant 1 : index
    %62 = memref.load %arg1[%c1_22] : memref<98xf32, #tpu.memory_space<smem>>
    %63 = vector.broadcast %62 : f32 to vector<2x256xf32>
    %64 = arith.mulf %63, %19 : vector<2x256xf32>
    %65 = arith.addf %61, %64 : vector<2x256xf32>
    %c50 = arith.constant 50 : index
    %66 = memref.load %arg1[%c50] : memref<98xf32, #tpu.memory_space<smem>>
    %67 = vector.broadcast %66 : f32 to vector<2x256xf32>
    %68 = arith.mulf %67, %22 : vector<2x256xf32>
    %69 = arith.addf %65, %68 : vector<2x256xf32>
    %c2_23 = arith.constant 2 : index
    %70 = memref.load %arg1[%c2_23] : memref<98xf32, #tpu.memory_space<smem>>
    %71 = vector.broadcast %70 : f32 to vector<2x256xf32>
    %72 = arith.mulf %71, %26 : vector<2x256xf32>
    %73 = arith.addf %69, %72 : vector<2x256xf32>
    %c51 = arith.constant 51 : index
    %74 = memref.load %arg1[%c51] : memref<98xf32, #tpu.memory_space<smem>>
    %75 = vector.broadcast %74 : f32 to vector<2x256xf32>
    %76 = arith.mulf %75, %29 : vector<2x256xf32>
    %77 = arith.addf %73, %76 : vector<2x256xf32>
    %c3 = arith.constant 3 : index
    %78 = memref.load %arg1[%c3] : memref<98xf32, #tpu.memory_space<smem>>
    %79 = vector.broadcast %78 : f32 to vector<2x256xf32>
    %80 = arith.mulf %79, %8 : vector<2x256xf32>
    %81 = arith.addf %77, %80 : vector<2x256xf32>
    %c52 = arith.constant 52 : index
    %82 = memref.load %arg1[%c52] : memref<98xf32, #tpu.memory_space<smem>>
    %83 = vector.broadcast %82 : f32 to vector<2x256xf32>
    %84 = arith.mulf %83, %6 : vector<2x256xf32>
    %85 = arith.addf %81, %84 : vector<2x256xf32>
    %c4_24 = arith.constant 4 : index
    %86 = memref.load %arg1[%c4_24] : memref<98xf32, #tpu.memory_space<smem>>
    %87 = vector.broadcast %86 : f32 to vector<2x256xf32>
    %88 = arith.mulf %87, %33 : vector<2x256xf32>
    %89 = arith.addf %85, %88 : vector<2x256xf32>
    %c53 = arith.constant 53 : index
    %90 = memref.load %arg1[%c53] : memref<98xf32, #tpu.memory_space<smem>>
    %91 = vector.broadcast %90 : f32 to vector<2x256xf32>
    %92 = arith.mulf %91, %36 : vector<2x256xf32>
    %93 = arith.addf %89, %92 : vector<2x256xf32>
    %c5_25 = arith.constant 5 : index
    %94 = memref.load %arg1[%c5_25] : memref<98xf32, #tpu.memory_space<smem>>
    %95 = vector.broadcast %94 : f32 to vector<2x256xf32>
    %96 = arith.mulf %95, %40 : vector<2x256xf32>
    %97 = arith.addf %93, %96 : vector<2x256xf32>
    %c54 = arith.constant 54 : index
    %98 = memref.load %arg1[%c54] : memref<98xf32, #tpu.memory_space<smem>>
    %99 = vector.broadcast %98 : f32 to vector<2x256xf32>
    %100 = arith.mulf %99, %43 : vector<2x256xf32>
    %101 = arith.addf %97, %100 : vector<2x256xf32>
    %c6_26 = arith.constant 6 : index
    %102 = memref.load %arg1[%c6_26] : memref<98xf32, #tpu.memory_space<smem>>
    %103 = vector.broadcast %102 : f32 to vector<2x256xf32>
    %104 = arith.mulf %103, %47 : vector<2x256xf32>
    %105 = arith.addf %101, %104 : vector<2x256xf32>
    %c55 = arith.constant 55 : index
    %106 = memref.load %arg1[%c55] : memref<98xf32, #tpu.memory_space<smem>>
    %107 = vector.broadcast %106 : f32 to vector<2x256xf32>
    %108 = arith.mulf %107, %50 : vector<2x256xf32>
    %109 = arith.addf %105, %108 : vector<2x256xf32>
    %c0_27 = arith.constant 0 : index
    %c0_28 = arith.constant 0 : index
    %110 = vector.load %arg4[%c0_27, %c0_28] : memref<7x256xf32, #tpu.memory_space<vmem>>, vector<1x256xf32>
    %c48_i32 = arith.constant 48 : i32
    %111 = tpu.dynamic_rotate %109 by %c48_i32 dim 1 : vector<2x256xf32>, i32 -> vector<2x256xf32>
    %112 = vector.broadcast %110 : vector<1x256xf32> to vector<2x256xf32>
    %113 = arith.mulf %111, %112 : vector<2x256xf32>
    %114 = arith.addf %52, %113 : vector<2x256xf32>
    %cst_29 = arith.constant 0.000000e+00 : f32
    %115 = vector.broadcast %cst_29 : f32 to vector<2x256xf32>
    %c7 = arith.constant 7 : index
    %116 = memref.load %arg1[%c7] : memref<98xf32, #tpu.memory_space<smem>>
    %117 = vector.broadcast %116 : f32 to vector<2x256xf32>
    %118 = arith.mulf %117, %12 : vector<2x256xf32>
    %119 = arith.addf %115, %118 : vector<2x256xf32>
    %c56 = arith.constant 56 : index
    %120 = memref.load %arg1[%c56] : memref<98xf32, #tpu.memory_space<smem>>
    %121 = vector.broadcast %120 : f32 to vector<2x256xf32>
    %122 = arith.mulf %121, %15 : vector<2x256xf32>
    %123 = arith.addf %119, %122 : vector<2x256xf32>
    %c8 = arith.constant 8 : index
    %124 = memref.load %arg1[%c8] : memref<98xf32, #tpu.memory_space<smem>>
    %125 = vector.broadcast %124 : f32 to vector<2x256xf32>
    %126 = arith.mulf %125, %19 : vector<2x256xf32>
    %127 = arith.addf %123, %126 : vector<2x256xf32>
    %c57 = arith.constant 57 : index
    %128 = memref.load %arg1[%c57] : memref<98xf32, #tpu.memory_space<smem>>
    %129 = vector.broadcast %128 : f32 to vector<2x256xf32>
    %130 = arith.mulf %129, %22 : vector<2x256xf32>
    %131 = arith.addf %127, %130 : vector<2x256xf32>
    %c9 = arith.constant 9 : index
    %132 = memref.load %arg1[%c9] : memref<98xf32, #tpu.memory_space<smem>>
    %133 = vector.broadcast %132 : f32 to vector<2x256xf32>
    %134 = arith.mulf %133, %26 : vector<2x256xf32>
    %135 = arith.addf %131, %134 : vector<2x256xf32>
    %c58 = arith.constant 58 : index
    %136 = memref.load %arg1[%c58] : memref<98xf32, #tpu.memory_space<smem>>
    %137 = vector.broadcast %136 : f32 to vector<2x256xf32>
    %138 = arith.mulf %137, %29 : vector<2x256xf32>
    %139 = arith.addf %135, %138 : vector<2x256xf32>
    %c10 = arith.constant 10 : index
    %140 = memref.load %arg1[%c10] : memref<98xf32, #tpu.memory_space<smem>>
    %141 = vector.broadcast %140 : f32 to vector<2x256xf32>
    %142 = arith.mulf %141, %8 : vector<2x256xf32>
    %143 = arith.addf %139, %142 : vector<2x256xf32>
    %c59 = arith.constant 59 : index
    %144 = memref.load %arg1[%c59] : memref<98xf32, #tpu.memory_space<smem>>
    %145 = vector.broadcast %144 : f32 to vector<2x256xf32>
    %146 = arith.mulf %145, %6 : vector<2x256xf32>
    %147 = arith.addf %143, %146 : vector<2x256xf32>
    %c11 = arith.constant 11 : index
    %148 = memref.load %arg1[%c11] : memref<98xf32, #tpu.memory_space<smem>>
    %149 = vector.broadcast %148 : f32 to vector<2x256xf32>
    %150 = arith.mulf %149, %33 : vector<2x256xf32>
    %151 = arith.addf %147, %150 : vector<2x256xf32>
    %c60 = arith.constant 60 : index
    %152 = memref.load %arg1[%c60] : memref<98xf32, #tpu.memory_space<smem>>
    %153 = vector.broadcast %152 : f32 to vector<2x256xf32>
    %154 = arith.mulf %153, %36 : vector<2x256xf32>
    %155 = arith.addf %151, %154 : vector<2x256xf32>
    %c12 = arith.constant 12 : index
    %156 = memref.load %arg1[%c12] : memref<98xf32, #tpu.memory_space<smem>>
    %157 = vector.broadcast %156 : f32 to vector<2x256xf32>
    %158 = arith.mulf %157, %40 : vector<2x256xf32>
    %159 = arith.addf %155, %158 : vector<2x256xf32>
    %c61 = arith.constant 61 : index
    %160 = memref.load %arg1[%c61] : memref<98xf32, #tpu.memory_space<smem>>
    %161 = vector.broadcast %160 : f32 to vector<2x256xf32>
    %162 = arith.mulf %161, %43 : vector<2x256xf32>
    %163 = arith.addf %159, %162 : vector<2x256xf32>
    %c13 = arith.constant 13 : index
    %164 = memref.load %arg1[%c13] : memref<98xf32, #tpu.memory_space<smem>>
    %165 = vector.broadcast %164 : f32 to vector<2x256xf32>
    %166 = arith.mulf %165, %47 : vector<2x256xf32>
    %167 = arith.addf %163, %166 : vector<2x256xf32>
    %c62 = arith.constant 62 : index
    %168 = memref.load %arg1[%c62] : memref<98xf32, #tpu.memory_space<smem>>
    %169 = vector.broadcast %168 : f32 to vector<2x256xf32>
    %170 = arith.mulf %169, %50 : vector<2x256xf32>
    %171 = arith.addf %167, %170 : vector<2x256xf32>
    %c1_30 = arith.constant 1 : index
    %c0_31 = arith.constant 0 : index
    %172 = vector.load %arg4[%c1_30, %c0_31] : memref<7x256xf32, #tpu.memory_space<vmem>>, vector<1x256xf32>
    %c32_i32 = arith.constant 32 : i32
    %173 = tpu.dynamic_rotate %171 by %c32_i32 dim 1 : vector<2x256xf32>, i32 -> vector<2x256xf32>
    %174 = vector.broadcast %172 : vector<1x256xf32> to vector<2x256xf32>
    %175 = arith.mulf %173, %174 : vector<2x256xf32>
    %176 = arith.addf %114, %175 : vector<2x256xf32>
    %cst_32 = arith.constant 0.000000e+00 : f32
    %177 = vector.broadcast %cst_32 : f32 to vector<2x256xf32>
    %c14 = arith.constant 14 : index
    %178 = memref.load %arg1[%c14] : memref<98xf32, #tpu.memory_space<smem>>
    %179 = vector.broadcast %178 : f32 to vector<2x256xf32>
    %180 = arith.mulf %179, %12 : vector<2x256xf32>
    %181 = arith.addf %177, %180 : vector<2x256xf32>
    %c63 = arith.constant 63 : index
    %182 = memref.load %arg1[%c63] : memref<98xf32, #tpu.memory_space<smem>>
    %183 = vector.broadcast %182 : f32 to vector<2x256xf32>
    %184 = arith.mulf %183, %15 : vector<2x256xf32>
    %185 = arith.addf %181, %184 : vector<2x256xf32>
    %c15 = arith.constant 15 : index
    %186 = memref.load %arg1[%c15] : memref<98xf32, #tpu.memory_space<smem>>
    %187 = vector.broadcast %186 : f32 to vector<2x256xf32>
    %188 = arith.mulf %187, %19 : vector<2x256xf32>
    %189 = arith.addf %185, %188 : vector<2x256xf32>
    %c64 = arith.constant 64 : index
    %190 = memref.load %arg1[%c64] : memref<98xf32, #tpu.memory_space<smem>>
    %191 = vector.broadcast %190 : f32 to vector<2x256xf32>
    %192 = arith.mulf %191, %22 : vector<2x256xf32>
    %193 = arith.addf %189, %192 : vector<2x256xf32>
    %c16 = arith.constant 16 : index
    %194 = memref.load %arg1[%c16] : memref<98xf32, #tpu.memory_space<smem>>
    %195 = vector.broadcast %194 : f32 to vector<2x256xf32>
    %196 = arith.mulf %195, %26 : vector<2x256xf32>
    %197 = arith.addf %193, %196 : vector<2x256xf32>
    %c65 = arith.constant 65 : index
    %198 = memref.load %arg1[%c65] : memref<98xf32, #tpu.memory_space<smem>>
    %199 = vector.broadcast %198 : f32 to vector<2x256xf32>
    %200 = arith.mulf %199, %29 : vector<2x256xf32>
    %201 = arith.addf %197, %200 : vector<2x256xf32>
    %c17 = arith.constant 17 : index
    %202 = memref.load %arg1[%c17] : memref<98xf32, #tpu.memory_space<smem>>
    %203 = vector.broadcast %202 : f32 to vector<2x256xf32>
    %204 = arith.mulf %203, %8 : vector<2x256xf32>
    %205 = arith.addf %201, %204 : vector<2x256xf32>
    %c66 = arith.constant 66 : index
    %206 = memref.load %arg1[%c66] : memref<98xf32, #tpu.memory_space<smem>>
    %207 = vector.broadcast %206 : f32 to vector<2x256xf32>
    %208 = arith.mulf %207, %6 : vector<2x256xf32>
    %209 = arith.addf %205, %208 : vector<2x256xf32>
    %c18 = arith.constant 18 : index
    %210 = memref.load %arg1[%c18] : memref<98xf32, #tpu.memory_space<smem>>
    %211 = vector.broadcast %210 : f32 to vector<2x256xf32>
    %212 = arith.mulf %211, %33 : vector<2x256xf32>
    %213 = arith.addf %209, %212 : vector<2x256xf32>
    %c67 = arith.constant 67 : index
    %214 = memref.load %arg1[%c67] : memref<98xf32, #tpu.memory_space<smem>>
    %215 = vector.broadcast %214 : f32 to vector<2x256xf32>
    %216 = arith.mulf %215, %36 : vector<2x256xf32>
    %217 = arith.addf %213, %216 : vector<2x256xf32>
    %c19 = arith.constant 19 : index
    %218 = memref.load %arg1[%c19] : memref<98xf32, #tpu.memory_space<smem>>
    %219 = vector.broadcast %218 : f32 to vector<2x256xf32>
    %220 = arith.mulf %219, %40 : vector<2x256xf32>
    %221 = arith.addf %217, %220 : vector<2x256xf32>
    %c68 = arith.constant 68 : index
    %222 = memref.load %arg1[%c68] : memref<98xf32, #tpu.memory_space<smem>>
    %223 = vector.broadcast %222 : f32 to vector<2x256xf32>
    %224 = arith.mulf %223, %43 : vector<2x256xf32>
    %225 = arith.addf %221, %224 : vector<2x256xf32>
    %c20 = arith.constant 20 : index
    %226 = memref.load %arg1[%c20] : memref<98xf32, #tpu.memory_space<smem>>
    %227 = vector.broadcast %226 : f32 to vector<2x256xf32>
    %228 = arith.mulf %227, %47 : vector<2x256xf32>
    %229 = arith.addf %225, %228 : vector<2x256xf32>
    %c69 = arith.constant 69 : index
    %230 = memref.load %arg1[%c69] : memref<98xf32, #tpu.memory_space<smem>>
    %231 = vector.broadcast %230 : f32 to vector<2x256xf32>
    %232 = arith.mulf %231, %50 : vector<2x256xf32>
    %233 = arith.addf %229, %232 : vector<2x256xf32>
    %c2_33 = arith.constant 2 : index
    %c0_34 = arith.constant 0 : index
    %234 = vector.load %arg4[%c2_33, %c0_34] : memref<7x256xf32, #tpu.memory_space<vmem>>, vector<1x256xf32>
    %c16_i32 = arith.constant 16 : i32
    %235 = tpu.dynamic_rotate %233 by %c16_i32 dim 1 : vector<2x256xf32>, i32 -> vector<2x256xf32>
    %236 = vector.broadcast %234 : vector<1x256xf32> to vector<2x256xf32>
    %237 = arith.mulf %235, %236 : vector<2x256xf32>
    %238 = arith.addf %176, %237 : vector<2x256xf32>
    %cst_35 = arith.constant 0.000000e+00 : f32
    %239 = vector.broadcast %cst_35 : f32 to vector<2x256xf32>
    %c21 = arith.constant 21 : index
    %240 = memref.load %arg1[%c21] : memref<98xf32, #tpu.memory_space<smem>>
    %241 = vector.broadcast %240 : f32 to vector<2x256xf32>
    %242 = arith.mulf %241, %12 : vector<2x256xf32>
    %243 = arith.addf %239, %242 : vector<2x256xf32>
    %c70 = arith.constant 70 : index
    %244 = memref.load %arg1[%c70] : memref<98xf32, #tpu.memory_space<smem>>
    %245 = vector.broadcast %244 : f32 to vector<2x256xf32>
    %246 = arith.mulf %245, %15 : vector<2x256xf32>
    %247 = arith.addf %243, %246 : vector<2x256xf32>
    %c22 = arith.constant 22 : index
    %248 = memref.load %arg1[%c22] : memref<98xf32, #tpu.memory_space<smem>>
    %249 = vector.broadcast %248 : f32 to vector<2x256xf32>
    %250 = arith.mulf %249, %19 : vector<2x256xf32>
    %251 = arith.addf %247, %250 : vector<2x256xf32>
    %c71 = arith.constant 71 : index
    %252 = memref.load %arg1[%c71] : memref<98xf32, #tpu.memory_space<smem>>
    %253 = vector.broadcast %252 : f32 to vector<2x256xf32>
    %254 = arith.mulf %253, %22 : vector<2x256xf32>
    %255 = arith.addf %251, %254 : vector<2x256xf32>
    %c23 = arith.constant 23 : index
    %256 = memref.load %arg1[%c23] : memref<98xf32, #tpu.memory_space<smem>>
    %257 = vector.broadcast %256 : f32 to vector<2x256xf32>
    %258 = arith.mulf %257, %26 : vector<2x256xf32>
    %259 = arith.addf %255, %258 : vector<2x256xf32>
    %c72 = arith.constant 72 : index
    %260 = memref.load %arg1[%c72] : memref<98xf32, #tpu.memory_space<smem>>
    %261 = vector.broadcast %260 : f32 to vector<2x256xf32>
    %262 = arith.mulf %261, %29 : vector<2x256xf32>
    %263 = arith.addf %259, %262 : vector<2x256xf32>
    %c24 = arith.constant 24 : index
    %264 = memref.load %arg1[%c24] : memref<98xf32, #tpu.memory_space<smem>>
    %265 = vector.broadcast %264 : f32 to vector<2x256xf32>
    %266 = arith.mulf %265, %8 : vector<2x256xf32>
    %267 = arith.addf %263, %266 : vector<2x256xf32>
    %c73 = arith.constant 73 : index
    %268 = memref.load %arg1[%c73] : memref<98xf32, #tpu.memory_space<smem>>
    %269 = vector.broadcast %268 : f32 to vector<2x256xf32>
    %270 = arith.mulf %269, %6 : vector<2x256xf32>
    %271 = arith.addf %267, %270 : vector<2x256xf32>
    %c25 = arith.constant 25 : index
    %272 = memref.load %arg1[%c25] : memref<98xf32, #tpu.memory_space<smem>>
    %273 = vector.broadcast %272 : f32 to vector<2x256xf32>
    %274 = arith.mulf %273, %33 : vector<2x256xf32>
    %275 = arith.addf %271, %274 : vector<2x256xf32>
    %c74 = arith.constant 74 : index
    %276 = memref.load %arg1[%c74] : memref<98xf32, #tpu.memory_space<smem>>
    %277 = vector.broadcast %276 : f32 to vector<2x256xf32>
    %278 = arith.mulf %277, %36 : vector<2x256xf32>
    %279 = arith.addf %275, %278 : vector<2x256xf32>
    %c26 = arith.constant 26 : index
    %280 = memref.load %arg1[%c26] : memref<98xf32, #tpu.memory_space<smem>>
    %281 = vector.broadcast %280 : f32 to vector<2x256xf32>
    %282 = arith.mulf %281, %40 : vector<2x256xf32>
    %283 = arith.addf %279, %282 : vector<2x256xf32>
    %c75 = arith.constant 75 : index
    %284 = memref.load %arg1[%c75] : memref<98xf32, #tpu.memory_space<smem>>
    %285 = vector.broadcast %284 : f32 to vector<2x256xf32>
    %286 = arith.mulf %285, %43 : vector<2x256xf32>
    %287 = arith.addf %283, %286 : vector<2x256xf32>
    %c27 = arith.constant 27 : index
    %288 = memref.load %arg1[%c27] : memref<98xf32, #tpu.memory_space<smem>>
    %289 = vector.broadcast %288 : f32 to vector<2x256xf32>
    %290 = arith.mulf %289, %47 : vector<2x256xf32>
    %291 = arith.addf %287, %290 : vector<2x256xf32>
    %c76 = arith.constant 76 : index
    %292 = memref.load %arg1[%c76] : memref<98xf32, #tpu.memory_space<smem>>
    %293 = vector.broadcast %292 : f32 to vector<2x256xf32>
    %294 = arith.mulf %293, %50 : vector<2x256xf32>
    %295 = arith.addf %291, %294 : vector<2x256xf32>
    %296 = arith.addf %238, %295 : vector<2x256xf32>
    %cst_36 = arith.constant 0.000000e+00 : f32
    %297 = vector.broadcast %cst_36 : f32 to vector<2x256xf32>
    %c28 = arith.constant 28 : index
    %298 = memref.load %arg1[%c28] : memref<98xf32, #tpu.memory_space<smem>>
    %299 = vector.broadcast %298 : f32 to vector<2x256xf32>
    %300 = arith.mulf %299, %12 : vector<2x256xf32>
    %301 = arith.addf %297, %300 : vector<2x256xf32>
    %c77 = arith.constant 77 : index
    %302 = memref.load %arg1[%c77] : memref<98xf32, #tpu.memory_space<smem>>
    %303 = vector.broadcast %302 : f32 to vector<2x256xf32>
    %304 = arith.mulf %303, %15 : vector<2x256xf32>
    %305 = arith.addf %301, %304 : vector<2x256xf32>
    %c29 = arith.constant 29 : index
    %306 = memref.load %arg1[%c29] : memref<98xf32, #tpu.memory_space<smem>>
    %307 = vector.broadcast %306 : f32 to vector<2x256xf32>
    %308 = arith.mulf %307, %19 : vector<2x256xf32>
    %309 = arith.addf %305, %308 : vector<2x256xf32>
    %c78 = arith.constant 78 : index
    %310 = memref.load %arg1[%c78] : memref<98xf32, #tpu.memory_space<smem>>
    %311 = vector.broadcast %310 : f32 to vector<2x256xf32>
    %312 = arith.mulf %311, %22 : vector<2x256xf32>
    %313 = arith.addf %309, %312 : vector<2x256xf32>
    %c30 = arith.constant 30 : index
    %314 = memref.load %arg1[%c30] : memref<98xf32, #tpu.memory_space<smem>>
    %315 = vector.broadcast %314 : f32 to vector<2x256xf32>
    %316 = arith.mulf %315, %26 : vector<2x256xf32>
    %317 = arith.addf %313, %316 : vector<2x256xf32>
    %c79 = arith.constant 79 : index
    %318 = memref.load %arg1[%c79] : memref<98xf32, #tpu.memory_space<smem>>
    %319 = vector.broadcast %318 : f32 to vector<2x256xf32>
    %320 = arith.mulf %319, %29 : vector<2x256xf32>
    %321 = arith.addf %317, %320 : vector<2x256xf32>
    %c31 = arith.constant 31 : index
    %322 = memref.load %arg1[%c31] : memref<98xf32, #tpu.memory_space<smem>>
    %323 = vector.broadcast %322 : f32 to vector<2x256xf32>
    %324 = arith.mulf %323, %8 : vector<2x256xf32>
    %325 = arith.addf %321, %324 : vector<2x256xf32>
    %c80 = arith.constant 80 : index
    %326 = memref.load %arg1[%c80] : memref<98xf32, #tpu.memory_space<smem>>
    %327 = vector.broadcast %326 : f32 to vector<2x256xf32>
    %328 = arith.mulf %327, %6 : vector<2x256xf32>
    %329 = arith.addf %325, %328 : vector<2x256xf32>
    %c32 = arith.constant 32 : index
    %330 = memref.load %arg1[%c32] : memref<98xf32, #tpu.memory_space<smem>>
    %331 = vector.broadcast %330 : f32 to vector<2x256xf32>
    %332 = arith.mulf %331, %33 : vector<2x256xf32>
    %333 = arith.addf %329, %332 : vector<2x256xf32>
    %c81 = arith.constant 81 : index
    %334 = memref.load %arg1[%c81] : memref<98xf32, #tpu.memory_space<smem>>
    %335 = vector.broadcast %334 : f32 to vector<2x256xf32>
    %336 = arith.mulf %335, %36 : vector<2x256xf32>
    %337 = arith.addf %333, %336 : vector<2x256xf32>
    %c33 = arith.constant 33 : index
    %338 = memref.load %arg1[%c33] : memref<98xf32, #tpu.memory_space<smem>>
    %339 = vector.broadcast %338 : f32 to vector<2x256xf32>
    %340 = arith.mulf %339, %40 : vector<2x256xf32>
    %341 = arith.addf %337, %340 : vector<2x256xf32>
    %c82 = arith.constant 82 : index
    %342 = memref.load %arg1[%c82] : memref<98xf32, #tpu.memory_space<smem>>
    %343 = vector.broadcast %342 : f32 to vector<2x256xf32>
    %344 = arith.mulf %343, %43 : vector<2x256xf32>
    %345 = arith.addf %341, %344 : vector<2x256xf32>
    %c34 = arith.constant 34 : index
    %346 = memref.load %arg1[%c34] : memref<98xf32, #tpu.memory_space<smem>>
    %347 = vector.broadcast %346 : f32 to vector<2x256xf32>
    %348 = arith.mulf %347, %47 : vector<2x256xf32>
    %349 = arith.addf %345, %348 : vector<2x256xf32>
    %c83 = arith.constant 83 : index
    %350 = memref.load %arg1[%c83] : memref<98xf32, #tpu.memory_space<smem>>
    %351 = vector.broadcast %350 : f32 to vector<2x256xf32>
    %352 = arith.mulf %351, %50 : vector<2x256xf32>
    %353 = arith.addf %349, %352 : vector<2x256xf32>
    %c4_37 = arith.constant 4 : index
    %c0_38 = arith.constant 0 : index
    %354 = vector.load %arg4[%c4_37, %c0_38] : memref<7x256xf32, #tpu.memory_space<vmem>>, vector<1x256xf32>
    %c240_i32 = arith.constant 240 : i32
    %355 = tpu.dynamic_rotate %353 by %c240_i32 dim 1 : vector<2x256xf32>, i32 -> vector<2x256xf32>
    %356 = vector.broadcast %354 : vector<1x256xf32> to vector<2x256xf32>
    %357 = arith.mulf %355, %356 : vector<2x256xf32>
    %358 = arith.addf %296, %357 : vector<2x256xf32>
    %cst_39 = arith.constant 0.000000e+00 : f32
    %359 = vector.broadcast %cst_39 : f32 to vector<2x256xf32>
    %c35 = arith.constant 35 : index
    %360 = memref.load %arg1[%c35] : memref<98xf32, #tpu.memory_space<smem>>
    %361 = vector.broadcast %360 : f32 to vector<2x256xf32>
    %362 = arith.mulf %361, %12 : vector<2x256xf32>
    %363 = arith.addf %359, %362 : vector<2x256xf32>
    %c84 = arith.constant 84 : index
    %364 = memref.load %arg1[%c84] : memref<98xf32, #tpu.memory_space<smem>>
    %365 = vector.broadcast %364 : f32 to vector<2x256xf32>
    %366 = arith.mulf %365, %15 : vector<2x256xf32>
    %367 = arith.addf %363, %366 : vector<2x256xf32>
    %c36 = arith.constant 36 : index
    %368 = memref.load %arg1[%c36] : memref<98xf32, #tpu.memory_space<smem>>
    %369 = vector.broadcast %368 : f32 to vector<2x256xf32>
    %370 = arith.mulf %369, %19 : vector<2x256xf32>
    %371 = arith.addf %367, %370 : vector<2x256xf32>
    %c85 = arith.constant 85 : index
    %372 = memref.load %arg1[%c85] : memref<98xf32, #tpu.memory_space<smem>>
    %373 = vector.broadcast %372 : f32 to vector<2x256xf32>
    %374 = arith.mulf %373, %22 : vector<2x256xf32>
    %375 = arith.addf %371, %374 : vector<2x256xf32>
    %c37 = arith.constant 37 : index
    %376 = memref.load %arg1[%c37] : memref<98xf32, #tpu.memory_space<smem>>
    %377 = vector.broadcast %376 : f32 to vector<2x256xf32>
    %378 = arith.mulf %377, %26 : vector<2x256xf32>
    %379 = arith.addf %375, %378 : vector<2x256xf32>
    %c86 = arith.constant 86 : index
    %380 = memref.load %arg1[%c86] : memref<98xf32, #tpu.memory_space<smem>>
    %381 = vector.broadcast %380 : f32 to vector<2x256xf32>
    %382 = arith.mulf %381, %29 : vector<2x256xf32>
    %383 = arith.addf %379, %382 : vector<2x256xf32>
    %c38 = arith.constant 38 : index
    %384 = memref.load %arg1[%c38] : memref<98xf32, #tpu.memory_space<smem>>
    %385 = vector.broadcast %384 : f32 to vector<2x256xf32>
    %386 = arith.mulf %385, %8 : vector<2x256xf32>
    %387 = arith.addf %383, %386 : vector<2x256xf32>
    %c87 = arith.constant 87 : index
    %388 = memref.load %arg1[%c87] : memref<98xf32, #tpu.memory_space<smem>>
    %389 = vector.broadcast %388 : f32 to vector<2x256xf32>
    %390 = arith.mulf %389, %6 : vector<2x256xf32>
    %391 = arith.addf %387, %390 : vector<2x256xf32>
    %c39 = arith.constant 39 : index
    %392 = memref.load %arg1[%c39] : memref<98xf32, #tpu.memory_space<smem>>
    %393 = vector.broadcast %392 : f32 to vector<2x256xf32>
    %394 = arith.mulf %393, %33 : vector<2x256xf32>
    %395 = arith.addf %391, %394 : vector<2x256xf32>
    %c88 = arith.constant 88 : index
    %396 = memref.load %arg1[%c88] : memref<98xf32, #tpu.memory_space<smem>>
    %397 = vector.broadcast %396 : f32 to vector<2x256xf32>
    %398 = arith.mulf %397, %36 : vector<2x256xf32>
    %399 = arith.addf %395, %398 : vector<2x256xf32>
    %c40 = arith.constant 40 : index
    %400 = memref.load %arg1[%c40] : memref<98xf32, #tpu.memory_space<smem>>
    %401 = vector.broadcast %400 : f32 to vector<2x256xf32>
    %402 = arith.mulf %401, %40 : vector<2x256xf32>
    %403 = arith.addf %399, %402 : vector<2x256xf32>
    %c89 = arith.constant 89 : index
    %404 = memref.load %arg1[%c89] : memref<98xf32, #tpu.memory_space<smem>>
    %405 = vector.broadcast %404 : f32 to vector<2x256xf32>
    %406 = arith.mulf %405, %43 : vector<2x256xf32>
    %407 = arith.addf %403, %406 : vector<2x256xf32>
    %c41 = arith.constant 41 : index
    %408 = memref.load %arg1[%c41] : memref<98xf32, #tpu.memory_space<smem>>
    %409 = vector.broadcast %408 : f32 to vector<2x256xf32>
    %410 = arith.mulf %409, %47 : vector<2x256xf32>
    %411 = arith.addf %407, %410 : vector<2x256xf32>
    %c90 = arith.constant 90 : index
    %412 = memref.load %arg1[%c90] : memref<98xf32, #tpu.memory_space<smem>>
    %413 = vector.broadcast %412 : f32 to vector<2x256xf32>
    %414 = arith.mulf %413, %50 : vector<2x256xf32>
    %415 = arith.addf %411, %414 : vector<2x256xf32>
    %c5_40 = arith.constant 5 : index
    %c0_41 = arith.constant 0 : index
    %416 = vector.load %arg4[%c5_40, %c0_41] : memref<7x256xf32, #tpu.memory_space<vmem>>, vector<1x256xf32>
    %c224_i32 = arith.constant 224 : i32
    %417 = tpu.dynamic_rotate %415 by %c224_i32 dim 1 : vector<2x256xf32>, i32 -> vector<2x256xf32>
    %418 = vector.broadcast %416 : vector<1x256xf32> to vector<2x256xf32>
    %419 = arith.mulf %417, %418 : vector<2x256xf32>
    %420 = arith.addf %358, %419 : vector<2x256xf32>
    %cst_42 = arith.constant 0.000000e+00 : f32
    %421 = vector.broadcast %cst_42 : f32 to vector<2x256xf32>
    %c42 = arith.constant 42 : index
    %422 = memref.load %arg1[%c42] : memref<98xf32, #tpu.memory_space<smem>>
    %423 = vector.broadcast %422 : f32 to vector<2x256xf32>
    %424 = arith.mulf %423, %12 : vector<2x256xf32>
    %425 = arith.addf %421, %424 : vector<2x256xf32>
    %c91 = arith.constant 91 : index
    %426 = memref.load %arg1[%c91] : memref<98xf32, #tpu.memory_space<smem>>
    %427 = vector.broadcast %426 : f32 to vector<2x256xf32>
    %428 = arith.mulf %427, %15 : vector<2x256xf32>
    %429 = arith.addf %425, %428 : vector<2x256xf32>
    %c43 = arith.constant 43 : index
    %430 = memref.load %arg1[%c43] : memref<98xf32, #tpu.memory_space<smem>>
    %431 = vector.broadcast %430 : f32 to vector<2x256xf32>
    %432 = arith.mulf %431, %19 : vector<2x256xf32>
    %433 = arith.addf %429, %432 : vector<2x256xf32>
    %c92 = arith.constant 92 : index
    %434 = memref.load %arg1[%c92] : memref<98xf32, #tpu.memory_space<smem>>
    %435 = vector.broadcast %434 : f32 to vector<2x256xf32>
    %436 = arith.mulf %435, %22 : vector<2x256xf32>
    %437 = arith.addf %433, %436 : vector<2x256xf32>
    %c44 = arith.constant 44 : index
    %438 = memref.load %arg1[%c44] : memref<98xf32, #tpu.memory_space<smem>>
    %439 = vector.broadcast %438 : f32 to vector<2x256xf32>
    %440 = arith.mulf %439, %26 : vector<2x256xf32>
    %441 = arith.addf %437, %440 : vector<2x256xf32>
    %c93 = arith.constant 93 : index
    %442 = memref.load %arg1[%c93] : memref<98xf32, #tpu.memory_space<smem>>
    %443 = vector.broadcast %442 : f32 to vector<2x256xf32>
    %444 = arith.mulf %443, %29 : vector<2x256xf32>
    %445 = arith.addf %441, %444 : vector<2x256xf32>
    %c45 = arith.constant 45 : index
    %446 = memref.load %arg1[%c45] : memref<98xf32, #tpu.memory_space<smem>>
    %447 = vector.broadcast %446 : f32 to vector<2x256xf32>
    %448 = arith.mulf %447, %8 : vector<2x256xf32>
    %449 = arith.addf %445, %448 : vector<2x256xf32>
    %c94 = arith.constant 94 : index
    %450 = memref.load %arg1[%c94] : memref<98xf32, #tpu.memory_space<smem>>
    %451 = vector.broadcast %450 : f32 to vector<2x256xf32>
    %452 = arith.mulf %451, %6 : vector<2x256xf32>
    %453 = arith.addf %449, %452 : vector<2x256xf32>
    %c46 = arith.constant 46 : index
    %454 = memref.load %arg1[%c46] : memref<98xf32, #tpu.memory_space<smem>>
    %455 = vector.broadcast %454 : f32 to vector<2x256xf32>
    %456 = arith.mulf %455, %33 : vector<2x256xf32>
    %457 = arith.addf %453, %456 : vector<2x256xf32>
    %c95 = arith.constant 95 : index
    %458 = memref.load %arg1[%c95] : memref<98xf32, #tpu.memory_space<smem>>
    %459 = vector.broadcast %458 : f32 to vector<2x256xf32>
    %460 = arith.mulf %459, %36 : vector<2x256xf32>
    %461 = arith.addf %457, %460 : vector<2x256xf32>
    %c47 = arith.constant 47 : index
    %462 = memref.load %arg1[%c47] : memref<98xf32, #tpu.memory_space<smem>>
    %463 = vector.broadcast %462 : f32 to vector<2x256xf32>
    %464 = arith.mulf %463, %40 : vector<2x256xf32>
    %465 = arith.addf %461, %464 : vector<2x256xf32>
    %c96 = arith.constant 96 : index
    %466 = memref.load %arg1[%c96] : memref<98xf32, #tpu.memory_space<smem>>
    %467 = vector.broadcast %466 : f32 to vector<2x256xf32>
    %468 = arith.mulf %467, %43 : vector<2x256xf32>
    %469 = arith.addf %465, %468 : vector<2x256xf32>
    %c48 = arith.constant 48 : index
    %470 = memref.load %arg1[%c48] : memref<98xf32, #tpu.memory_space<smem>>
    %471 = vector.broadcast %470 : f32 to vector<2x256xf32>
    %472 = arith.mulf %471, %47 : vector<2x256xf32>
    %473 = arith.addf %469, %472 : vector<2x256xf32>
    %c97 = arith.constant 97 : index
    %474 = memref.load %arg1[%c97] : memref<98xf32, #tpu.memory_space<smem>>
    %475 = vector.broadcast %474 : f32 to vector<2x256xf32>
    %476 = arith.mulf %475, %50 : vector<2x256xf32>
    %477 = arith.addf %473, %476 : vector<2x256xf32>
    %c6_43 = arith.constant 6 : index
    %c0_44 = arith.constant 0 : index
    %478 = vector.load %arg4[%c6_43, %c0_44] : memref<7x256xf32, #tpu.memory_space<vmem>>, vector<1x256xf32>
    %c208_i32 = arith.constant 208 : i32
    %479 = tpu.dynamic_rotate %477 by %c208_i32 dim 1 : vector<2x256xf32>, i32 -> vector<2x256xf32>
    %480 = vector.broadcast %478 : vector<1x256xf32> to vector<2x256xf32>
    %481 = arith.mulf %479, %480 : vector<2x256xf32>
    %482 = arith.addf %420, %481 : vector<2x256xf32>
    %483 = arith.negf %482 : vector<2x256xf32>
    %484 = math.exp %483 : vector<2x256xf32>
    %cst_45 = arith.constant 1.000000e+00 : f32
    %485 = vector.broadcast %cst_45 : f32 to vector<2x256xf32>
    %486 = arith.addf %485, %484 : vector<2x256xf32>
    %487 = arith.divf %485, %486 : vector<2x256xf32>
    %c0_46 = arith.constant 0 : index
    %c0_47 = arith.constant 0 : index
    %c0_48 = arith.constant 0 : index
    %488 = vector.load %arg5[%c0_46, %c0_47, %c0_48] : memref<2x4x256xf32, #tpu.memory_space<vmem>>, vector<2x4x256xf32>
    %489 = vector.shape_cast %487 : vector<2x256xf32> to vector<2x1x256xf32>
    %490 = vector.broadcast %489 : vector<2x1x256xf32> to vector<2x4x256xf32>
    %491 = arith.mulf %488, %490 : vector<2x4x256xf32>
    %c0_49 = arith.constant 0 : index
    %c0_50 = arith.constant 0 : index
    %c0_51 = arith.constant 0 : index
    %492 = vector.load %arg6[%c0_49, %c0_50, %c0_51] : memref<2x4x256xf32, #tpu.memory_space<vmem>>, vector<2x4x256xf32>
    tpu.vector_store %arg6[%c0_49, %c0_50, %c0_51], %491 {strides = array<i32>} : memref<2x4x256xf32, #tpu.memory_space<vmem>>, vector<2x4x256xf32>,
    return
  }
  func.func @transform_0(%arg0: i32) -> i32 {
    %c0_i32 = arith.constant 0 : i32
    %c0_i32_0 = arith.constant 0 : i32
    return %c0_i32 : i32
  }
  func.func @transform_1(%arg0: i32) -> i32 {
    %c0_i32 = arith.constant 0 : i32
    %c0_i32_0 = arith.constant 0 : i32
    return %c0_i32 : i32
  }
  func.func @transform_2(%arg0: i32) -> (i32, i32) {
    %c0_i32 = arith.constant 0 : i32
    %c0_i32_0 = arith.constant 0 : i32
    %c0_i32_1 = arith.constant 0 : i32
    return %c0_i32, %c0_i32_0 : i32, i32
  }
  func.func @transform_3(%arg0: i32) -> (i32, i32) {
    %c0_i32 = arith.constant 0 : i32
    %c0_i32_0 = arith.constant 0 : i32
    %c0_i32_1 = arith.constant 0 : i32
    return %c0_i32, %c0_i32_0 : i32, i32
  }
  func.func @transform_4(%arg0: i32) -> (i32, i32, i32) {
    %c0_i32 = arith.constant 0 : i32
    %c0_i32_0 = arith.constant 0 : i32
    %c0_i32_1 = arith.constant 0 : i32
    return %arg0, %c0_i32, %c0_i32_0 : i32, i32, i32
  }
  func.func @transform_5(%arg0: i32) -> (i32, i32, i32) {
    %c0_i32 = arith.constant 0 : i32
    %c0_i32_0 = arith.constant 0 : i32
    %c0_i32_1 = arith.constant 0 : i32
    return %arg0, %c0_i32, %c0_i32_0 : i32, i32, i32
  }
}

</mosaic_0001>

<llo_original>
// kernel: tpu_custom_call.1
$region0: #{tpu_custom_call.1}
  #allocation0 [shape = 'u32[]', space=smem, size = 0x4, offset = 0x4, fixed_abs, tag = 'smem constant byte address 0x4 - core index']
  #allocation1 [shape = 'u32[144,128]{1,0:T(1,128)}', space=vmem, size = 0x12000, scoped, tag = 'internal scratch']
  #allocation2 [shape = 'f32[1]{0:T(128)S(6)}', space=smem, size = 0x200, scoped, tag = 'scoped memory for tpu_custom_call.1']
  %s0 = inlined_call_operand.vmem [shape: f32[98], index: 0, kind: input, shape index: {}]
  %s1 = inlined_call_operand.<no memory space> [shape: f32[1], index: 1, kind: input, shape index: {}]
  %s2 = inlined_call_operand.hbm [shape: f32[7,256], index: 2, kind: input, shape index: {}]
  %s3 = inlined_call_operand.hbm [shape: f32[7,256], index: 3, kind: input, shape index: {}]
  %s4 = inlined_call_operand.hbm [shape: f32[2,4,256], index: 4, kind: input, shape index: {}]
  %s5 = inlined_call_operand.hbm [shape: f32[2,4,256], index: 5, kind: output, shape index: {}]
  %s6 = sld [smem:[#allocation0]]
  $region46: #{tpu_custom_call.1} parent=0
    _
  %s8 = ssub.s32 1, %s6
  %s9 = scalar_select 0, %s8, %s6
  %10 = sst [smem:[#allocation2]] %s1
  $region1: #{tpu_custom_call.1} parent=0
    #allocation3 [shape = 'u8[512]{0}', space=smem, size = 0x200, scoped, tag = 'input window, operand 0, single buffered']
    #allocation4 [shape = 's32[1]{0}', space=sflag, size = 0x4, scoped, tag = 'scoped memory for tpu_custom_call.1']
    #allocation5 [shape = 's32[1]{0}', space=sflag, size = 0x4, scoped, tag = 'scoped memory for tpu_custom_call.1']
    #allocation6 [shape = 's32[1]{0}', space=sflag, size = 0x4, scoped, tag = 'scoped memory for tpu_custom_call.1']
    #allocation7 [shape = 'u8[8192]{0}', space=vmem, size = 0x2000, scoped, tag = 'input window, operand 2, single buffered']
    #allocation8 [shape = 'u8[8192]{0}', space=vmem, size = 0x2000, scoped, tag = 'input window, operand 3, single buffered']
    #allocation9 [shape = 's32[1]{0}', space=sflag, size = 0x4, scoped, tag = 'scoped memory for tpu_custom_call.1']
    #allocation10 [shape = 'u8[8192]{0}', space=vmem, size = 0x2000, scoped, tag = 'input window, operand 4, single buffered']
    #allocation11 [shape = 'u8[8192]{0}', space=vmem, size = 0x2000, scoped, tag = 'output window, operand 0, single buffered']
    %11 = vsyncpa [#allocation6], 0
    %12 = vsyncpa [#allocation4], 0
    %13 = vsyncpa [#allocation9], 0
    %14 = vsyncpa [#allocation5], 0
    // Predicated region
    $region2: #{tpu_custom_call.1} parent=1 // pred_check
      _
    $region3: #{tpu_custom_call.1} parent=1 // pred_check_branch
      %16 = sbr.rel (0) target = $region5
    $region4: #{tpu_custom_call.1} parent=1 // pred_region
      %s18 = ssub.s32 16, 16
      %19 = vsyncadd [#allocation6], %s18
      %s21 = sshll.u32 %s0, 4
      %s22 = int_to_ptr.vmem [resolvable:$true] %s21
      %24 = dma.vmem_to_smem %s22, 16, [#allocation3], [#allocation6]
    $region5: #{tpu_custom_call.1} parent=1 // pred_fallthru
      _
    // Predicated region
    $region6: #{tpu_custom_call.1} parent=1 // pred_check
      _
    $region7: #{tpu_custom_call.1} parent=1 // pred_check_branch
      %26 = sbr.rel (0) target = $region9
    $region8: #{tpu_custom_call.1} parent=1 // pred_region
      _
    $region9: #{tpu_custom_call.1} parent=1 // pred_fallthru
      _
    // Predicated region
    $region10: #{tpu_custom_call.1} parent=1 // pred_check
      _
    $region11: #{tpu_custom_call.1} parent=1 // pred_check_branch
      %28 = sbr.rel (0) target = $region13
    $region12: #{tpu_custom_call.1} parent=1 // pred_region
      %s30 = ssub.s32 256, 256
      %31 = vsyncadd [#allocation4], %s30
      %s33 = sshll.u32 [#allocation7], 4
      %s34 = int_to_ptr.vmem [resolvable:$true] %s33
      %36 = dma.hbm_to_vmem [thread:$0]  %s2, 256, %s34, [#allocation4]
    $region13: #{tpu_custom_call.1} parent=1 // pred_fallthru
      _
    // Predicated region
    $region14: #{tpu_custom_call.1} parent=1 // pred_check
      _
    $region15: #{tpu_custom_call.1} parent=1 // pred_check_branch
      %38 = sbr.rel (0) target = $region17
    $region16: #{tpu_custom_call.1} parent=1 // pred_region
      %s40 = ssub.s32 256, 256
      %41 = vsyncadd [#allocation9], %s40
      %s43 = sshll.u32 [#allocation8], 4
      %s44 = int_to_ptr.vmem [resolvable:$true] %s43
      %46 = dma.hbm_to_vmem [thread:$0]  %s3, 256, %s44, [#allocation9]
    $region17: #{tpu_custom_call.1} parent=1 // pred_fallthru
      _
    // Predicated region
    $region18: #{tpu_custom_call.1} parent=1 // pred_check
      _
    $region19: #{tpu_custom_call.1} parent=1 // pred_check_branch
      %48 = sbr.rel (0) target = $region21
    $region20: #{tpu_custom_call.1} parent=1 // pred_region
      %s50 = ssub.s32 256, 256
      %51 = vsyncadd [#allocation9], %s50
      %s52 = sshll.u32 [#allocation10], 4
      %s53 = int_to_ptr.vmem [resolvable:$true] %s52
      %58 = dma.hbm_to_vmem [thread:$0]  %s4, 256, %s53, [#allocation9], 128, 128, 8
    $region21: #{tpu_custom_call.1} parent=1 // pred_fallthru
      _
    // Predicated region
    $region22: #{tpu_custom_call.1} parent=1 // pred_check
      _
    $region23: #{tpu_custom_call.1} parent=1 // pred_check_branch
      %60 = sbr.rel (0) target = $region25
    $region24: #{tpu_custom_call.1} parent=1 // pred_region
      %61 = dma.done [#allocation6], 16
    $region25: #{tpu_custom_call.1} parent=1 // pred_fallthru
      _
    // Predicated region
    $region26: #{tpu_custom_call.1} parent=1 // pred_check
      _
    $region27: #{tpu_custom_call.1} parent=1 // pred_check_branch
      %63 = sbr.rel (0) target = $region29
    $region28: #{tpu_custom_call.1} parent=1 // pred_region
      %64 = dma.done [#allocation4], 256
    $region29: #{tpu_custom_call.1} parent=1 // pred_fallthru
      _
    // Predicated region
    $region30: #{tpu_custom_call.1} parent=1 // pred_check
      _
    $region31: #{tpu_custom_call.1} parent=1 // pred_check_branch
      %66 = sbr.rel (0) target = $region33
    $region32: #{tpu_custom_call.1} parent=1 // pred_region
      %67 = dma.done [#allocation9], 256
    $region33: #{tpu_custom_call.1} parent=1 // pred_fallthru
      _
    // Predicated region
    $region34: #{tpu_custom_call.1} parent=1 // pred_check
      _
    $region35: #{tpu_custom_call.1} parent=1 // pred_check_branch
      %69 = sbr.rel (0) target = $region37
    $region36: #{tpu_custom_call.1} parent=1 // pred_region
      %70 = dma.done [#allocation9], 256
    $region37: #{tpu_custom_call.1} parent=1 // pred_fallthru
      _
    %71 = sfence
    %v72 = vld [vmem:[#allocation10] sm:$0xff]
    %v73 = vld [vmem:[#allocation10 + $0x8] sm:$0xff]
    %v76 = vcombine.high %v72, %v72
    %v77 = vcombine.high %v73, %v73
    %vm80 = vcmask 1043456
    %v81 = vsel %vm80, %v72, 0.0
    %v82 = vrot.slane %v81, 4
    %v83 = vadd.f32 %v81, %v82
    %v84 = vrot.slane %v83, 2
    %v85 = vadd.f32 %v83, %v84
    %v86 = vrot.slane %v85, 1
    %v87 = vadd.f32 %v85, %v86
    %v88 = vsel %vm80, %v76, 0.0
    %v89 = vrot.slane %v88, 4
    %v90 = vadd.f32 %v88, %v89
    %v91 = vrot.slane %v90, 2
    %v92 = vadd.f32 %v90, %v91
    %v93 = vrot.slane %v92, 1
    %v94 = vadd.f32 %v92, %v93
    %v95 = vsel %vm80, %v73, 0.0
    %v96 = vrot.slane %v95, 4
    %v97 = vadd.f32 %v95, %v96
    %v98 = vrot.slane %v97, 2
    %v99 = vadd.f32 %v97, %v98
    %v100 = vrot.slane %v99, 1
    %v101 = vadd.f32 %v99, %v100
    %v102 = vsel %vm80, %v77, 0.0
    %v103 = vrot.slane %v102, 4
    %v104 = vadd.f32 %v102, %v103
    %v105 = vrot.slane %v104, 2
    %v106 = vadd.f32 %v104, %v105
    %v107 = vrot.slane %v106, 1
    %v108 = vadd.f32 %v106, %v107
    %v109 = vadd.f32 %v87, 0.0
    %v110 = vadd.f32 %v94, 0.0
    %v111 = vadd.f32 %v101, 0.0
    %v112 = vadd.f32 %v108, 0.0
    %v113 = vsel %vm80, %v72, -inf
    %v114 = vrot.slane %v113, 4
    %v115 = vmax.f32 %v113, %v114
    %v116 = vrot.slane %v115, 2
    %v117 = vmax.f32 %v115, %v116
    %v118 = vrot.slane %v117, 1
    %v119 = vmax.f32 %v117, %v118
    %v120 = vsel %vm80, %v76, -inf
    %v121 = vrot.slane %v120, 4
    %v122 = vmax.f32 %v120, %v121
    %v123 = vrot.slane %v122, 2
    %v124 = vmax.f32 %v122, %v123
    %v125 = vrot.slane %v124, 1
    %v126 = vmax.f32 %v124, %v125
    %v127 = vsel %vm80, %v73, -inf
    %v128 = vrot.slane %v127, 4
    %v129 = vmax.f32 %v127, %v128
    %v130 = vrot.slane %v129, 2
    %v131 = vmax.f32 %v129, %v130
    %v132 = vrot.slane %v131, 1
    %v133 = vmax.f32 %v131, %v132
    %v134 = vsel %vm80, %v77, -inf
    %v135 = vrot.slane %v134, 4
    %v136 = vmax.f32 %v134, %v135
    %v137 = vrot.slane %v136, 2
    %v138 = vmax.f32 %v136, %v137
    %v139 = vrot.slane %v138, 1
    %v140 = vmax.f32 %v138, %v139
    %v141 = vmul.f32 %v109, 0.25
    %v142 = vmul.f32 %v110, 0.25
    %v143 = vmul.f32 %v111, 0.25
    %v144 = vmul.f32 %v112, 0.25
    %v145 = vld [vmem:[#allocation7] ss:$8 sm:$0x3]
    %vm150 = vcmask 1041409
    %v151 = vsel %vm150, %v143, %v141
    %v152 = vsel %vm150, %v144, %v142
    %155 = vrot.lane.b32.xlu0 %v151, 3
    %v156 = vpop.permute.xlu0 %155
    %157 = vrot.lane.b32.xlu0 %v152, 3
    %v158 = vpop.permute.xlu0 %157
    %v159 = vlaneseq
    %v160 = vand.u32 %v159, 127
    %vm161 = vcmp.lt.s32.totalorder %v160, 3
    %v162 = vsel %vm161, %v156, %v158
    %v163 = vsel %vm161, %v158, %v156
    %v165 = vlaneseq
    %v166 = vshrl.u32 %v165, 7
    %v167 = vsub.s32 0, %v166
    %v168 = vrot.slane %v145, %v167
    %v169 = vlaneseq
    %v170 = vshrl.u32 %v169, 7
    %v171 = vsub.s32 1, %v170
    %v172 = vrot.slane %v145, %v171
    %v175 = vmul.f32 %v163, %v168
    %v176 = vmul.f32 %v162, %v172
    %v181 = vsel %vm150, %v133, %v119
    %v182 = vsel %vm150, %v140, %v126
    %185 = vrot.lane.b32.xlu0 %v181, 3
    %v186 = vpop.permute.xlu0 %185
    %187 = vrot.lane.b32.xlu0 %v182, 3
    %v188 = vpop.permute.xlu0 %187
    %v189 = vsel %vm161, %v186, %v188
    %v190 = vsel %vm161, %v188, %v186
    %v191 = vmul.f32 %v190, %v168
    %v192 = vmul.f32 %v189, %v172
    %s193 = scalar_lea.vmem [#allocation7], 1
    %v194 = vld [vmem:[%s193] ss:$8 sm:$0x3]
    %195 = vrot.lane.b32.xlu0 %v151, 2
    %v196 = vpop.permute.xlu0 %195
    %197 = vrot.lane.b32.xlu0 %v152, 2
    %v198 = vpop.permute.xlu0 %197
    %vm199 = vcmp.lt.s32.totalorder %v160, 2
    %v200 = vsel %vm199, %v196, %v198
    %v201 = vsel %vm199, %v198, %v196
    %v203 = vlaneseq
    %v204 = vshrl.u32 %v203, 7
    %v205 = vsub.s32 0, %v204
    %v206 = vrot.slane %v194, %v205
    %v207 = vlaneseq
    %v208 = vshrl.u32 %v207, 7
    %v209 = vsub.s32 1, %v208
    %v210 = vrot.slane %v194, %v209
    %v213 = vmul.f32 %v201, %v206
    %v214 = vmul.f32 %v200, %v210
    %215 = vrot.lane.b32.xlu0 %v181, 2
    %v216 = vpop.permute.xlu0 %215
    %217 = vrot.lane.b32.xlu0 %v182, 2
    %v218 = vpop.permute.xlu0 %217
    %v219 = vsel %vm199, %v216, %v218
    %v220 = vsel %vm199, %v218, %v216
    %v221 = vmul.f32 %v220, %v206
    %v222 = vmul.f32 %v219, %v210
    %s223 = scalar_lea.vmem [#allocation7], 2
    %v224 = vld [vmem:[%s223] ss:$8 sm:$0x3]
    %225 = vrot.lane.b32.xlu0 %v151, 1
    %v226 = vpop.permute.xlu0 %225
    %227 = vrot.lane.b32.xlu0 %v152, 1
    %v228 = vpop.permute.xlu0 %227
    %vm229 = vcmp.lt.s32.totalorder %v160, 1
    %v230 = vsel %vm229, %v226, %v228
    %v231 = vsel %vm229, %v228, %v226
    %v233 = vlaneseq
    %v234 = vshrl.u32 %v233, 7
    %v235 = vsub.s32 0, %v234
    %v236 = vrot.slane %v224, %v235
    %v237 = vlaneseq
    %v238 = vshrl.u32 %v237, 7
    %v239 = vsub.s32 1, %v238
    %v240 = vrot.slane %v224, %v239
    %v243 = vmul.f32 %v231, %v236
    %v244 = vmul.f32 %v230, %v240
    %245 = vrot.lane.b32.xlu0 %v181, 1
    %v246 = vpop.permute.xlu0 %245
    %247 = vrot.lane.b32.xlu0 %v182, 1
    %v248 = vpop.permute.xlu0 %247
    %v249 = vsel %vm229, %v246, %v248
    %v250 = vsel %vm229, %v248, %v246
    %v251 = vmul.f32 %v250, %v236
    %v252 = vmul.f32 %v249, %v240
    %s253 = scalar_lea.vmem [#allocation7], 4
    %v254 = vld [vmem:[%s253] ss:$8 sm:$0x3]
    %255 = vrot.lane.b32.xlu0 %v151, 127
    %v256 = vpop.permute.xlu0 %255
    %257 = vrot.lane.b32.xlu0 %v152, 127
    %v258 = vpop.permute.xlu0 %257
    %vm259 = vcmp.lt.s32.totalorder %v160, 127
    %v260 = vsel %vm259, %v256, %v258
    %v261 = vsel %vm259, %v258, %v256
    %v263 = vlaneseq
    %v264 = vshrl.u32 %v263, 7
    %v265 = vsub.s32 0, %v264
    %v266 = vrot.slane %v254, %v265
    %v267 = vlaneseq
    %v268 = vshrl.u32 %v267, 7
    %v269 = vsub.s32 1, %v268
    %v270 = vrot.slane %v254, %v269
    %v273 = vmul.f32 %v260, %v266
    %v274 = vmul.f32 %v261, %v270
    %275 = vrot.lane.b32.xlu0 %v181, 127
    %v276 = vpop.permute.xlu0 %275
    %277 = vrot.lane.b32.xlu0 %v182, 127
    %v278 = vpop.permute.xlu0 %277
    %v279 = vsel %vm259, %v276, %v278
    %v280 = vsel %vm259, %v278, %v276
    %v281 = vmul.f32 %v279, %v266
    %v282 = vmul.f32 %v280, %v270
    %s283 = scalar_lea.vmem [#allocation7], 5
    %v284 = vld [vmem:[%s283] ss:$8 sm:$0x3]
    %285 = vrot.lane.b32.xlu0 %v151, 126
    %v286 = vpop.permute.xlu0 %285
    %287 = vrot.lane.b32.xlu0 %v152, 126
    %v288 = vpop.permute.xlu0 %287
    %vm289 = vcmp.lt.s32.totalorder %v160, 126
    %v290 = vsel %vm289, %v286, %v288
    %v291 = vsel %vm289, %v288, %v286
    %v293 = vlaneseq
    %v294 = vshrl.u32 %v293, 7
    %v295 = vsub.s32 0, %v294
    %v296 = vrot.slane %v284, %v295
    %v297 = vlaneseq
    %v298 = vshrl.u32 %v297, 7
    %v299 = vsub.s32 1, %v298
    %v300 = vrot.slane %v284, %v299
    %v303 = vmul.f32 %v290, %v296
    %v304 = vmul.f32 %v291, %v300
    %305 = vrot.lane.b32.xlu0 %v181, 126
    %v306 = vpop.permute.xlu0 %305
    %307 = vrot.lane.b32.xlu0 %v182, 126
    %v308 = vpop.permute.xlu0 %307
    %v309 = vsel %vm289, %v306, %v308
    %v310 = vsel %vm289, %v308, %v306
    %v311 = vmul.f32 %v309, %v296
    %v312 = vmul.f32 %v310, %v300
    %s313 = scalar_lea.vmem [#allocation7], 6
    %v314 = vld [vmem:[%s313] ss:$8 sm:$0x3]
    %315 = vrot.lane.b32.xlu0 %v151, 125
    %v316 = vpop.permute.xlu0 %315
    %317 = vrot.lane.b32.xlu0 %v152, 125
    %v318 = vpop.permute.xlu0 %317
    %vm319 = vcmp.lt.s32.totalorder %v160, 125
    %v320 = vsel %vm319, %v316, %v318
    %v321 = vsel %vm319, %v318, %v316
    %v323 = vlaneseq
    %v324 = vshrl.u32 %v323, 7
    %v325 = vsub.s32 0, %v324
    %v326 = vrot.slane %v314, %v325
    %v327 = vlaneseq
    %v328 = vshrl.u32 %v327, 7
    %v329 = vsub.s32 1, %v328
    %v330 = vrot.slane %v314, %v329
    %v333 = vmul.f32 %v320, %v326
    %v334 = vmul.f32 %v321, %v330
    %335 = vrot.lane.b32.xlu0 %v181, 125
    %v336 = vpop.permute.xlu0 %335
    %337 = vrot.lane.b32.xlu0 %v182, 125
    %v338 = vpop.permute.xlu0 %337
    %v339 = vsel %vm319, %v336, %v338
    %v340 = vsel %vm319, %v338, %v336
    %v341 = vmul.f32 %v339, %v326
    %v342 = vmul.f32 %v340, %v330
    %s343 = sld [smem:[#allocation2]]
    %v344 = vstv %s343
    %s345 = sld [smem:[#allocation3]]
    %v346 = vstv %s345
    %v347 = vmul.f32 %v346, %v175
    %v348 = vmul.f32 %v346, %v176
    %v349 = vadd.f32 %v347, 0.0
    %v350 = vadd.f32 %v348, 0.0
    %s351 = sld [smem:[#allocation3 + $0x31]]
    %v352 = vstv %s351
    %v353 = vmul.f32 %v352, %v191
    %v354 = vmul.f32 %v352, %v192
    %v355 = vadd.f32 %v349, %v353
    %v356 = vadd.f32 %v350, %v354
    %s357 = sld [smem:[#allocation3 + $0x1]]
    %v358 = vstv %s357
    %v359 = vmul.f32 %v358, %v213
    %v360 = vmul.f32 %v358, %v214
    %v361 = vadd.f32 %v355, %v359
    %v362 = vadd.f32 %v356, %v360
    %s363 = sld [smem:[#allocation3 + $0x32]]
    %v364 = vstv %s363
    %v365 = vmul.f32 %v364, %v221
    %v366 = vmul.f32 %v364, %v222
    %v367 = vadd.f32 %v361, %v365
    %v368 = vadd.f32 %v362, %v366
    %s369 = sld [smem:[#allocation3 + $0x2]]
    %v370 = vstv %s369
    %v371 = vmul.f32 %v370, %v243
    %v372 = vmul.f32 %v370, %v244
    %v373 = vadd.f32 %v367, %v371
    %v374 = vadd.f32 %v368, %v372
    %s375 = sld [smem:[#allocation3 + $0x33]]
    %v376 = vstv %s375
    %v377 = vmul.f32 %v376, %v251
    %v378 = vmul.f32 %v376, %v252
    %v379 = vadd.f32 %v373, %v377
    %v380 = vadd.f32 %v374, %v378
    %s381 = sld [smem:[#allocation3 + $0x3]]
    %v382 = vstv %s381
    %v383 = vmul.f32 %v382, %v141
    %v384 = vmul.f32 %v382, %v142
    %v385 = vmul.f32 %v382, %v143
    %v386 = vmul.f32 %v382, %v144
    %v391 = vsel %vm150, %v385, %v383
    %v392 = vsel %vm150, %v386, %v384
    %v395 = vadd.f32 %v379, %v391
    %v396 = vadd.f32 %v380, %v392
    %s397 = sld [smem:[#allocation3 + $0x34]]
    %v398 = vstv %s397
    %v399 = vmul.f32 %v398, %v119
    %v400 = vmul.f32 %v398, %v126
    %v401 = vmul.f32 %v398, %v133
    %v402 = vmul.f32 %v398, %v140
    %v407 = vsel %vm150, %v401, %v399
    %v408 = vsel %vm150, %v402, %v400
    %v411 = vadd.f32 %v395, %v407
    %v412 = vadd.f32 %v396, %v408
    %s413 = sld [smem:[#allocation3 + $0x4]]
    %v414 = vstv %s413
    %v415 = vmul.f32 %v414, %v273
    %v416 = vmul.f32 %v414, %v274
    %v417 = vadd.f32 %v411, %v415
    %v418 = vadd.f32 %v412, %v416
    %s419 = sld [smem:[#allocation3 + $0x35]]
    %v420 = vstv %s419
    %v421 = vmul.f32 %v420, %v281
    %v422 = vmul.f32 %v420, %v282
    %v423 = vadd.f32 %v417, %v421
    %v424 = vadd.f32 %v418, %v422
    %s425 = sld [smem:[#allocation3 + $0x5]]
    %v426 = vstv %s425
    %v427 = vmul.f32 %v426, %v303
    %v428 = vmul.f32 %v426, %v304
    %v429 = vadd.f32 %v423, %v427
    %v430 = vadd.f32 %v424, %v428
    %s431 = sld [smem:[#allocation3 + $0x36]]
    %v432 = vstv %s431
    %v433 = vmul.f32 %v432, %v311
    %v434 = vmul.f32 %v432, %v312
    %v435 = vadd.f32 %v429, %v433
    %v436 = vadd.f32 %v430, %v434
    %s437 = sld [smem:[#allocation3 + $0x6]]
    %v438 = vstv %s437
    %v439 = vmul.f32 %v438, %v333
    %v440 = vmul.f32 %v438, %v334
    %v441 = vadd.f32 %v435, %v439
    %v442 = vadd.f32 %v436, %v440
    %s443 = sld [smem:[#allocation3 + $0x37]]
    %v444 = vstv %s443
    %v445 = vmul.f32 %v444, %v341
    %v446 = vmul.f32 %v444, %v342
    %v447 = vadd.f32 %v441, %v445
    %v448 = vadd.f32 %v442, %v446
    %v449 = vld [vmem:[#allocation8] ss:$8 sm:$0x3]
    %450 = vrot.lane.b32.xlu0 %v447, 48
    %v451 = vpop.permute.xlu0 %450
    %452 = vrot.lane.b32.xlu0 %v448, 48
    %v453 = vpop.permute.xlu0 %452
    %vm454 = vcmp.lt.s32.totalorder %v160, 48
    %v455 = vsel %vm454, %v451, %v453
    %v456 = vsel %vm454, %v453, %v451
    %v458 = vlaneseq
    %v459 = vshrl.u32 %v458, 7
    %v460 = vsub.s32 0, %v459
    %v461 = vrot.slane %v449, %v460
    %v462 = vlaneseq
    %v463 = vshrl.u32 %v462, 7
    %v464 = vsub.s32 1, %v463
    %v465 = vrot.slane %v449, %v464
    %v468 = vmul.f32 %v456, %v461
    %v469 = vmul.f32 %v455, %v465
    %v470 = vadd.f32 %v344, %v468
    %v471 = vadd.f32 %v344, %v469
    %s472 = sld [smem:[#allocation3 + $0x7]]
    %v473 = vstv %s472
    %v474 = vmul.f32 %v473, %v175
    %v475 = vmul.f32 %v473, %v176
    %v476 = vadd.f32 %v474, 0.0
    %v477 = vadd.f32 %v475, 0.0
    %s478 = sld [smem:[#allocation3 + $0x38]]
    %v479 = vstv %s478
    %v480 = vmul.f32 %v479, %v191
    %v481 = vmul.f32 %v479, %v192
    %v482 = vadd.f32 %v476, %v480
    %v483 = vadd.f32 %v477, %v481
    %s484 = sld [smem:[#allocation3 + $0x8]]
    %v485 = vstv %s484
    %v486 = vmul.f32 %v485, %v213
    %v487 = vmul.f32 %v485, %v214
    %v488 = vadd.f32 %v482, %v486
    %v489 = vadd.f32 %v483, %v487
    %s490 = sld [smem:[#allocation3 + $0x39]]
    %v491 = vstv %s490
    %v492 = vmul.f32 %v491, %v221
    %v493 = vmul.f32 %v491, %v222
    %v494 = vadd.f32 %v488, %v492
    %v495 = vadd.f32 %v489, %v493
    %s496 = sld [smem:[#allocation3 + $0x9]]
    %v497 = vstv %s496
    %v498 = vmul.f32 %v497, %v243
    %v499 = vmul.f32 %v497, %v244
    %v500 = vadd.f32 %v494, %v498
    %v501 = vadd.f32 %v495, %v499
    %s502 = sld [smem:[#allocation3 + $0x3a]]
    %v503 = vstv %s502
    %v504 = vmul.f32 %v503, %v251
    %v505 = vmul.f32 %v503, %v252
    %v506 = vadd.f32 %v500, %v504
    %v507 = vadd.f32 %v501, %v505
    %s508 = sld [smem:[#allocation3 + $0xa]]
    %v509 = vstv %s508
    %v510 = vmul.f32 %v509, %v141
    %v511 = vmul.f32 %v509, %v142
    %v512 = vmul.f32 %v509, %v143
    %v513 = vmul.f32 %v509, %v144
    %v518 = vsel %vm150, %v512, %v510
    %v519 = vsel %vm150, %v513, %v511
    %v522 = vadd.f32 %v506, %v518
    %v523 = vadd.f32 %v507, %v519
    %s524 = sld [smem:[#allocation3 + $0x3b]]
    %v525 = vstv %s524
    %v526 = vmul.f32 %v525, %v119
    %v527 = vmul.f32 %v525, %v126
    %v528 = vmul.f32 %v525, %v133
    %v529 = vmul.f32 %v525, %v140
    %v534 = vsel %vm150, %v528, %v526
    %v535 = vsel %vm150, %v529, %v527
    %v538 = vadd.f32 %v522, %v534
    %v539 = vadd.f32 %v523, %v535
    %s540 = sld [smem:[#allocation3 + $0xb]]
    %v541 = vstv %s540
    %v542 = vmul.f32 %v541, %v273
    %v543 = vmul.f32 %v541, %v274
    %v544 = vadd.f32 %v538, %v542
    %v545 = vadd.f32 %v539, %v543
    %s546 = sld [smem:[#allocation3 + $0x3c]]
    %v547 = vstv %s546
    %v548 = vmul.f32 %v547, %v281
    %v549 = vmul.f32 %v547, %v282
    %v550 = vadd.f32 %v544, %v548
    %v551 = vadd.f32 %v545, %v549
    %s552 = sld [smem:[#allocation3 + $0xc]]
    %v553 = vstv %s552
    %v554 = vmul.f32 %v553, %v303
    %v555 = vmul.f32 %v553, %v304
    %v556 = vadd.f32 %v550, %v554
    %v557 = vadd.f32 %v551, %v555
    %s558 = sld [smem:[#allocation3 + $0x3d]]
    %v559 = vstv %s558
    %v560 = vmul.f32 %v559, %v311
    %v561 = vmul.f32 %v559, %v312
    %v562 = vadd.f32 %v556, %v560
    %v563 = vadd.f32 %v557, %v561
    %s564 = sld [smem:[#allocation3 + $0xd]]
    %v565 = vstv %s564
    %v566 = vmul.f32 %v565, %v333
    %v567 = vmul.f32 %v565, %v334
    %v568 = vadd.f32 %v562, %v566
    %v569 = vadd.f32 %v563, %v567
    %s570 = sld [smem:[#allocation3 + $0x3e]]
    %v571 = vstv %s570
    %v572 = vmul.f32 %v571, %v341
    %v573 = vmul.f32 %v571, %v342
    %v574 = vadd.f32 %v568, %v572
    %v575 = vadd.f32 %v569, %v573
    %s576 = scalar_lea.vmem [#allocation8], 1
    %v577 = vld [vmem:[%s576] ss:$8 sm:$0x3]
    %578 = vrot.lane.b32.xlu0 %v574, 32
    %v579 = vpop.permute.xlu0 %578
    %580 = vrot.lane.b32.xlu0 %v575, 32
    %v581 = vpop.permute.xlu0 %580
    %vm582 = vcmp.lt.s32.totalorder %v160, 32
    %v583 = vsel %vm582, %v579, %v581
    %v584 = vsel %vm582, %v581, %v579
    %v586 = vlaneseq
    %v587 = vshrl.u32 %v586, 7
    %v588 = vsub.s32 0, %v587
    %v589 = vrot.slane %v577, %v588
    %v590 = vlaneseq
    %v591 = vshrl.u32 %v590, 7
    %v592 = vsub.s32 1, %v591
    %v593 = vrot.slane %v577, %v592
    %v596 = vmul.f32 %v584, %v589
    %v597 = vmul.f32 %v583, %v593
    %v598 = vadd.f32 %v470, %v596
    %v599 = vadd.f32 %v471, %v597
    %s600 = sld [smem:[#allocation3 + $0xe]]
    %v601 = vstv %s600
    %v602 = vmul.f32 %v601, %v175
    %v603 = vmul.f32 %v601, %v176
    %v604 = vadd.f32 %v602, 0.0
    %v605 = vadd.f32 %v603, 0.0
    %s606 = sld [smem:[#allocation3 + $0x3f]]
    %v607 = vstv %s606
    %v608 = vmul.f32 %v607, %v191
    %v609 = vmul.f32 %v607, %v192
    %v610 = vadd.f32 %v604, %v608
    %v611 = vadd.f32 %v605, %v609
    %s612 = sld [smem:[#allocation3 + $0xf]]
    %v613 = vstv %s612
    %v614 = vmul.f32 %v613, %v213
    %v615 = vmul.f32 %v613, %v214
    %v616 = vadd.f32 %v610, %v614
    %v617 = vadd.f32 %v611, %v615
    %s618 = sld [smem:[#allocation3 + $0x40]]
    %v619 = vstv %s618
    %v620 = vmul.f32 %v619, %v221
    %v621 = vmul.f32 %v619, %v222
    %v622 = vadd.f32 %v616, %v620
    %v623 = vadd.f32 %v617, %v621
    %s624 = sld [smem:[#allocation3 + $0x10]]
    %v625 = vstv %s624
    %v626 = vmul.f32 %v625, %v243
    %v627 = vmul.f32 %v625, %v244
    %v628 = vadd.f32 %v622, %v626
    %v629 = vadd.f32 %v623, %v627
    %s630 = sld [smem:[#allocation3 + $0x41]]
    %v631 = vstv %s630
    %v632 = vmul.f32 %v631, %v251
    %v633 = vmul.f32 %v631, %v252
    %v634 = vadd.f32 %v628, %v632
    %v635 = vadd.f32 %v629, %v633
    %s636 = sld [smem:[#allocation3 + $0x11]]
    %v637 = vstv %s636
    %v638 = vmul.f32 %v637, %v141
    %v639 = vmul.f32 %v637, %v142
    %v640 = vmul.f32 %v637, %v143
    %v641 = vmul.f32 %v637, %v144
    %v646 = vsel %vm150, %v640, %v638
    %v647 = vsel %vm150, %v641, %v639
    %v650 = vadd.f32 %v634, %v646
    %v651 = vadd.f32 %v635, %v647
    %s652 = sld [smem:[#allocation3 + $0x42]]
    %v653 = vstv %s652
    %v654 = vmul.f32 %v653, %v119
    %v655 = vmul.f32 %v653, %v126
    %v656 = vmul.f32 %v653, %v133
    %v657 = vmul.f32 %v653, %v140
    %v662 = vsel %vm150, %v656, %v654
    %v663 = vsel %vm150, %v657, %v655
    %v666 = vadd.f32 %v650, %v662
    %v667 = vadd.f32 %v651, %v663
    %s668 = sld [smem:[#allocation3 + $0x12]]
    %v669 = vstv %s668
    %v670 = vmul.f32 %v669, %v273
    %v671 = vmul.f32 %v669, %v274
    %v672 = vadd.f32 %v666, %v670
    %v673 = vadd.f32 %v667, %v671
    %s674 = sld [smem:[#allocation3 + $0x43]]
    %v675 = vstv %s674
    %v676 = vmul.f32 %v675, %v281
    %v677 = vmul.f32 %v675, %v282
    %v678 = vadd.f32 %v672, %v676
    %v679 = vadd.f32 %v673, %v677
    %s680 = sld [smem:[#allocation3 + $0x13]]
    %v681 = vstv %s680
    %v682 = vmul.f32 %v681, %v303
    %v683 = vmul.f32 %v681, %v304
    %v684 = vadd.f32 %v678, %v682
    %v685 = vadd.f32 %v679, %v683
    %s686 = sld [smem:[#allocation3 + $0x44]]
    %v687 = vstv %s686
    %v688 = vmul.f32 %v687, %v311
    %v689 = vmul.f32 %v687, %v312
    %v690 = vadd.f32 %v684, %v688
    %v691 = vadd.f32 %v685, %v689
    %s692 = sld [smem:[#allocation3 + $0x14]]
    %v693 = vstv %s692
    %v694 = vmul.f32 %v693, %v333
    %v695 = vmul.f32 %v693, %v334
    %v696 = vadd.f32 %v690, %v694
    %v697 = vadd.f32 %v691, %v695
    %s698 = sld [smem:[#allocation3 + $0x45]]
    %v699 = vstv %s698
    %v700 = vmul.f32 %v699, %v341
    %v701 = vmul.f32 %v699, %v342
    %v702 = vadd.f32 %v696, %v700
    %v703 = vadd.f32 %v697, %v701
    %s704 = scalar_lea.vmem [#allocation8], 2
    %v705 = vld [vmem:[%s704] ss:$8 sm:$0x3]
    %706 = vrot.lane.b32.xlu0 %v702, 16
    %v707 = vpop.permute.xlu0 %706
    %708 = vrot.lane.b32.xlu0 %v703, 16
    %v709 = vpop.permute.xlu0 %708
    %vm710 = vcmp.lt.s32.totalorder %v160, 16
    %v711 = vsel %vm710, %v707, %v709
    %v712 = vsel %vm710, %v709, %v707
    %v714 = vlaneseq
    %v715 = vshrl.u32 %v714, 7
    %v716 = vsub.s32 0, %v715
    %v717 = vrot.slane %v705, %v716
    %v718 = vlaneseq
    %v719 = vshrl.u32 %v718, 7
    %v720 = vsub.s32 1, %v719
    %v721 = vrot.slane %v705, %v720
    %v724 = vmul.f32 %v712, %v717
    %v725 = vmul.f32 %v711, %v721
    %v726 = vadd.f32 %v598, %v724
    %v727 = vadd.f32 %v599, %v725
    %s728 = sld [smem:[#allocation3 + $0x15]]
    %v729 = vstv %s728
    %v730 = vmul.f32 %v729, %v175
    %v731 = vmul.f32 %v729, %v176
    %v732 = vadd.f32 %v730, 0.0
    %v733 = vadd.f32 %v731, 0.0
    %s734 = sld [smem:[#allocation3 + $0x46]]
    %v735 = vstv %s734
    %v736 = vmul.f32 %v735, %v191
    %v737 = vmul.f32 %v735, %v192
    %v738 = vadd.f32 %v732, %v736
    %v739 = vadd.f32 %v733, %v737
    %s740 = sld [smem:[#allocation3 + $0x16]]
    %v741 = vstv %s740
    %v742 = vmul.f32 %v741, %v213
    %v743 = vmul.f32 %v741, %v214
    %v744 = vadd.f32 %v738, %v742
    %v745 = vadd.f32 %v739, %v743
    %s746 = sld [smem:[#allocation3 + $0x47]]
    %v747 = vstv %s746
    %v748 = vmul.f32 %v747, %v221
    %v749 = vmul.f32 %v747, %v222
    %v750 = vadd.f32 %v744, %v748
    %v751 = vadd.f32 %v745, %v749
    %s752 = sld [smem:[#allocation3 + $0x17]]
    %v753 = vstv %s752
    %v754 = vmul.f32 %v753, %v243
    %v755 = vmul.f32 %v753, %v244
    %v756 = vadd.f32 %v750, %v754
    %v757 = vadd.f32 %v751, %v755
    %s758 = sld [smem:[#allocation3 + $0x48]]
    %v759 = vstv %s758
    %v760 = vmul.f32 %v759, %v251
    %v761 = vmul.f32 %v759, %v252
    %v762 = vadd.f32 %v756, %v760
    %v763 = vadd.f32 %v757, %v761
    %s764 = sld [smem:[#allocation3 + $0x18]]
    %v765 = vstv %s764
    %v766 = vmul.f32 %v765, %v141
    %v767 = vmul.f32 %v765, %v142
    %v768 = vmul.f32 %v765, %v143
    %v769 = vmul.f32 %v765, %v144
    %v774 = vsel %vm150, %v768, %v766
    %v775 = vsel %vm150, %v769, %v767
    %v778 = vadd.f32 %v762, %v774
    %v779 = vadd.f32 %v763, %v775
    %s780 = sld [smem:[#allocation3 + $0x49]]
    %v781 = vstv %s780
    %v782 = vmul.f32 %v781, %v119
    %v783 = vmul.f32 %v781, %v126
    %v784 = vmul.f32 %v781, %v133
    %v785 = vmul.f32 %v781, %v140
    %v790 = vsel %vm150, %v784, %v782
    %v791 = vsel %vm150, %v785, %v783
    %v794 = vadd.f32 %v778, %v790
    %v795 = vadd.f32 %v779, %v791
    %s796 = sld [smem:[#allocation3 + $0x19]]
    %v797 = vstv %s796
    %v798 = vmul.f32 %v797, %v273
    %v799 = vmul.f32 %v797, %v274
    %v800 = vadd.f32 %v794, %v798
    %v801 = vadd.f32 %v795, %v799
    %s802 = sld [smem:[#allocation3 + $0x4a]]
    %v803 = vstv %s802
    %v804 = vmul.f32 %v803, %v281
    %v805 = vmul.f32 %v803, %v282
    %v806 = vadd.f32 %v800, %v804
    %v807 = vadd.f32 %v801, %v805
    %s808 = sld [smem:[#allocation3 + $0x1a]]
    %v809 = vstv %s808
    %v810 = vmul.f32 %v809, %v303
    %v811 = vmul.f32 %v809, %v304
    %v812 = vadd.f32 %v806, %v810
    %v813 = vadd.f32 %v807, %v811
    %s814 = sld [smem:[#allocation3 + $0x4b]]
    %v815 = vstv %s814
    %v816 = vmul.f32 %v815, %v311
    %v817 = vmul.f32 %v815, %v312
    %v818 = vadd.f32 %v812, %v816
    %v819 = vadd.f32 %v813, %v817
    %s820 = sld [smem:[#allocation3 + $0x1b]]
    %v821 = vstv %s820
    %v822 = vmul.f32 %v821, %v333
    %v823 = vmul.f32 %v821, %v334
    %v824 = vadd.f32 %v818, %v822
    %v825 = vadd.f32 %v819, %v823
    %s826 = sld [smem:[#allocation3 + $0x4c]]
    %v827 = vstv %s826
    %v828 = vmul.f32 %v827, %v341
    %v829 = vmul.f32 %v827, %v342
    %v830 = vadd.f32 %v824, %v828
    %v831 = vadd.f32 %v825, %v829
    %v832 = vadd.f32 %v726, %v830
    %v833 = vadd.f32 %v727, %v831
    %s834 = sld [smem:[#allocation3 + $0x1c]]
    %v835 = vstv %s834
    %v836 = vmul.f32 %v835, %v175
    %v837 = vmul.f32 %v835, %v176
    %v838 = vadd.f32 %v836, 0.0
    %v839 = vadd.f32 %v837, 0.0
    %s840 = sld [smem:[#allocation3 + $0x4d]]
    %v841 = vstv %s840
    %v842 = vmul.f32 %v841, %v191
    %v843 = vmul.f32 %v841, %v192
    %v844 = vadd.f32 %v838, %v842
    %v845 = vadd.f32 %v839, %v843
    %s846 = sld [smem:[#allocation3 + $0x1d]]
    %v847 = vstv %s846
    %v848 = vmul.f32 %v847, %v213
    %v849 = vmul.f32 %v847, %v214
    %v850 = vadd.f32 %v844, %v848
    %v851 = vadd.f32 %v845, %v849
    %s852 = sld [smem:[#allocation3 + $0x4e]]
    %v853 = vstv %s852
    %v854 = vmul.f32 %v853, %v221
    %v855 = vmul.f32 %v853, %v222
    %v856 = vadd.f32 %v850, %v854
    %v857 = vadd.f32 %v851, %v855
    %s858 = sld [smem:[#allocation3 + $0x1e]]
    %v859 = vstv %s858
    %v860 = vmul.f32 %v859, %v243
    %v861 = vmul.f32 %v859, %v244
    %v862 = vadd.f32 %v856, %v860
    %v863 = vadd.f32 %v857, %v861
    %s864 = sld [smem:[#allocation3 + $0x4f]]
    %v865 = vstv %s864
    %v866 = vmul.f32 %v865, %v251
    %v867 = vmul.f32 %v865, %v252
    %v868 = vadd.f32 %v862, %v866
    %v869 = vadd.f32 %v863, %v867
    %s870 = sld [smem:[#allocation3 + $0x1f]]
    %v871 = vstv %s870
    %v872 = vmul.f32 %v871, %v141
    %v873 = vmul.f32 %v871, %v142
    %v874 = vmul.f32 %v871, %v143
    %v875 = vmul.f32 %v871, %v144
    %v880 = vsel %vm150, %v874, %v872
    %v881 = vsel %vm150, %v875, %v873
    %v884 = vadd.f32 %v868, %v880
    %v885 = vadd.f32 %v869, %v881
    %s886 = sld [smem:[#allocation3 + $0x50]]
    %v887 = vstv %s886
    %v888 = vmul.f32 %v887, %v119
    %v889 = vmul.f32 %v887, %v126
    %v890 = vmul.f32 %v887, %v133
    %v891 = vmul.f32 %v887, %v140
    %v896 = vsel %vm150, %v890, %v888
    %v897 = vsel %vm150, %v891, %v889
    %v900 = vadd.f32 %v884, %v896
    %v901 = vadd.f32 %v885, %v897
    %s902 = sld [smem:[#allocation3 + $0x20]]
    %v903 = vstv %s902
    %v904 = vmul.f32 %v903, %v273
    %v905 = vmul.f32 %v903, %v274
    %v906 = vadd.f32 %v900, %v904
    %v907 = vadd.f32 %v901, %v905
    %s908 = sld [smem:[#allocation3 + $0x51]]
    %v909 = vstv %s908
    %v910 = vmul.f32 %v909, %v281
    %v911 = vmul.f32 %v909, %v282
    %v912 = vadd.f32 %v906, %v910
    %v913 = vadd.f32 %v907, %v911
    %s914 = sld [smem:[#allocation3 + $0x21]]
    %v915 = vstv %s914
    %v916 = vmul.f32 %v915, %v303
    %v917 = vmul.f32 %v915, %v304
    %v918 = vadd.f32 %v912, %v916
    %v919 = vadd.f32 %v913, %v917
    %s920 = sld [smem:[#allocation3 + $0x52]]
    %v921 = vstv %s920
    %v922 = vmul.f32 %v921, %v311
    %v923 = vmul.f32 %v921, %v312
    %v924 = vadd.f32 %v918, %v922
    %v925 = vadd.f32 %v919, %v923
    %s926 = sld [smem:[#allocation3 + $0x22]]
    %v927 = vstv %s926
    %v928 = vmul.f32 %v927, %v333
    %v929 = vmul.f32 %v927, %v334
    %v930 = vadd.f32 %v924, %v928
    %v931 = vadd.f32 %v925, %v929
    %s932 = sld [smem:[#allocation3 + $0x53]]
    %v933 = vstv %s932
    %v934 = vmul.f32 %v933, %v341
    %v935 = vmul.f32 %v933, %v342
    %v936 = vadd.f32 %v930, %v934
    %v937 = vadd.f32 %v931, %v935
    %s938 = scalar_lea.vmem [#allocation8], 4
    %v939 = vld [vmem:[%s938] ss:$8 sm:$0x3]
    %940 = vrot.lane.b32.xlu0 %v936, 112
    %v941 = vpop.permute.xlu0 %940
    %942 = vrot.lane.b32.xlu0 %v937, 112
    %v943 = vpop.permute.xlu0 %942
    %vm944 = vcmp.lt.s32.totalorder %v160, 112
    %v945 = vsel %vm944, %v941, %v943
    %v946 = vsel %vm944, %v943, %v941
    %v948 = vlaneseq
    %v949 = vshrl.u32 %v948, 7
    %v950 = vsub.s32 0, %v949
    %v951 = vrot.slane %v939, %v950
    %v952 = vlaneseq
    %v953 = vshrl.u32 %v952, 7
    %v954 = vsub.s32 1, %v953
    %v955 = vrot.slane %v939, %v954
    %v958 = vmul.f32 %v945, %v951
    %v959 = vmul.f32 %v946, %v955
    %v960 = vadd.f32 %v832, %v958
    %v961 = vadd.f32 %v833, %v959
    %s962 = sld [smem:[#allocation3 + $0x23]]
    %v963 = vstv %s962
    %v964 = vmul.f32 %v963, %v175
    %v965 = vmul.f32 %v963, %v176
    %v966 = vadd.f32 %v964, 0.0
    %v967 = vadd.f32 %v965, 0.0
    %s968 = sld [smem:[#allocation3 + $0x54]]
    %v969 = vstv %s968
    %v970 = vmul.f32 %v969, %v191
    %v971 = vmul.f32 %v969, %v192
    %v972 = vadd.f32 %v966, %v970
    %v973 = vadd.f32 %v967, %v971
    %s974 = sld [smem:[#allocation3 + $0x24]]
    %v975 = vstv %s974
    %v976 = vmul.f32 %v975, %v213
    %v977 = vmul.f32 %v975, %v214
    %v978 = vadd.f32 %v972, %v976
    %v979 = vadd.f32 %v973, %v977
    %s980 = sld [smem:[#allocation3 + $0x55]]
    %v981 = vstv %s980
    %v982 = vmul.f32 %v981, %v221
    %v983 = vmul.f32 %v981, %v222
    %v984 = vadd.f32 %v978, %v982
    %v985 = vadd.f32 %v979, %v983
    %s986 = sld [smem:[#allocation3 + $0x25]]
    %v987 = vstv %s986
    %v988 = vmul.f32 %v987, %v243
    %v989 = vmul.f32 %v987, %v244
    %v990 = vadd.f32 %v984, %v988
    %v991 = vadd.f32 %v985, %v989
    %s992 = sld [smem:[#allocation3 + $0x56]]
    %v993 = vstv %s992
    %v994 = vmul.f32 %v993, %v251
    %v995 = vmul.f32 %v993, %v252
    %v996 = vadd.f32 %v990, %v994
    %v997 = vadd.f32 %v991, %v995
    %s998 = sld [smem:[#allocation3 + $0x26]]
    %v999 = vstv %s998
    %v1000 = vmul.f32 %v999, %v141
    %v1001 = vmul.f32 %v999, %v142
    %v1002 = vmul.f32 %v999, %v143
    %v1003 = vmul.f32 %v999, %v144
    %v1008 = vsel %vm150, %v1002, %v1000
    %v1009 = vsel %vm150, %v1003, %v1001
    %v1012 = vadd.f32 %v996, %v1008
    %v1013 = vadd.f32 %v997, %v1009
    %s1014 = sld [smem:[#allocation3 + $0x57]]
    %v1015 = vstv %s1014
    %v1016 = vmul.f32 %v1015, %v119
    %v1017 = vmul.f32 %v1015, %v126
    %v1018 = vmul.f32 %v1015, %v133
    %v1019 = vmul.f32 %v1015, %v140
    %v1024 = vsel %vm150, %v1018, %v1016
    %v1025 = vsel %vm150, %v1019, %v1017
    %v1028 = vadd.f32 %v1012, %v1024
    %v1029 = vadd.f32 %v1013, %v1025
    %s1030 = sld [smem:[#allocation3 + $0x27]]
    %v1031 = vstv %s1030
    %v1032 = vmul.f32 %v1031, %v273
    %v1033 = vmul.f32 %v1031, %v274
    %v1034 = vadd.f32 %v1028, %v1032
    %v1035 = vadd.f32 %v1029, %v1033
    %s1036 = sld [smem:[#allocation3 + $0x58]]
    %v1037 = vstv %s1036
    %v1038 = vmul.f32 %v1037, %v281
    %v1039 = vmul.f32 %v1037, %v282
    %v1040 = vadd.f32 %v1034, %v1038
    %v1041 = vadd.f32 %v1035, %v1039
    %s1042 = sld [smem:[#allocation3 + $0x28]]
    %v1043 = vstv %s1042
    %v1044 = vmul.f32 %v1043, %v303
    %v1045 = vmul.f32 %v1043, %v304
    %v1046 = vadd.f32 %v1040, %v1044
    %v1047 = vadd.f32 %v1041, %v1045
    %s1048 = sld [smem:[#allocation3 + $0x59]]
    %v1049 = vstv %s1048
    %v1050 = vmul.f32 %v1049, %v311
    %v1051 = vmul.f32 %v1049, %v312
    %v1052 = vadd.f32 %v1046, %v1050
    %v1053 = vadd.f32 %v1047, %v1051
    %s1054 = sld [smem:[#allocation3 + $0x29]]
    %v1055 = vstv %s1054
    %v1056 = vmul.f32 %v1055, %v333
    %v1057 = vmul.f32 %v1055, %v334
    %v1058 = vadd.f32 %v1052, %v1056
    %v1059 = vadd.f32 %v1053, %v1057
    %s1060 = sld [smem:[#allocation3 + $0x5a]]
    %v1061 = vstv %s1060
    %v1062 = vmul.f32 %v1061, %v341
    %v1063 = vmul.f32 %v1061, %v342
    %v1064 = vadd.f32 %v1058, %v1062
    %v1065 = vadd.f32 %v1059, %v1063
    %s1066 = scalar_lea.vmem [#allocation8], 5
    %v1067 = vld [vmem:[%s1066] ss:$8 sm:$0x3]
    %1068 = vrot.lane.b32.xlu0 %v1064, 96
    %v1069 = vpop.permute.xlu0 %1068
    %1070 = vrot.lane.b32.xlu0 %v1065, 96
    %v1071 = vpop.permute.xlu0 %1070
    %vm1072 = vcmp.lt.s32.totalorder %v160, 96
    %v1073 = vsel %vm1072, %v1069, %v1071
    %v1074 = vsel %vm1072, %v1071, %v1069
    %v1076 = vlaneseq
    %v1077 = vshrl.u32 %v1076, 7
    %v1078 = vsub.s32 0, %v1077
    %v1079 = vrot.slane %v1067, %v1078
    %v1080 = vlaneseq
    %v1081 = vshrl.u32 %v1080, 7
    %v1082 = vsub.s32 1, %v1081
    %v1083 = vrot.slane %v1067, %v1082
    %v1086 = vmul.f32 %v1073, %v1079
    %v1087 = vmul.f32 %v1074, %v1083
    %v1088 = vadd.f32 %v960, %v1086
    %v1089 = vadd.f32 %v961, %v1087
    %s1090 = sld [smem:[#allocation3 + $0x2a]]
    %v1091 = vstv %s1090
    %v1092 = vmul.f32 %v1091, %v175
    %v1093 = vmul.f32 %v1091, %v176
    %v1094 = vadd.f32 %v1092, 0.0
    %v1095 = vadd.f32 %v1093, 0.0
    %s1096 = sld [smem:[#allocation3 + $0x5b]]
    %v1097 = vstv %s1096
    %v1098 = vmul.f32 %v1097, %v191
    %v1099 = vmul.f32 %v1097, %v192
    %v1100 = vadd.f32 %v1094, %v1098
    %v1101 = vadd.f32 %v1095, %v1099
    %s1102 = sld [smem:[#allocation3 + $0x2b]]
    %v1103 = vstv %s1102
    %v1104 = vmul.f32 %v1103, %v213
    %v1105 = vmul.f32 %v1103, %v214
    %v1106 = vadd.f32 %v1100, %v1104
    %v1107 = vadd.f32 %v1101, %v1105
    %s1108 = sld [smem:[#allocation3 + $0x5c]]
    %v1109 = vstv %s1108
    %v1110 = vmul.f32 %v1109, %v221
    %v1111 = vmul.f32 %v1109, %v222
    %v1112 = vadd.f32 %v1106, %v1110
    %v1113 = vadd.f32 %v1107, %v1111
    %s1114 = sld [smem:[#allocation3 + $0x2c]]
    %v1115 = vstv %s1114
    %v1116 = vmul.f32 %v1115, %v243
    %v1117 = vmul.f32 %v1115, %v244
    %v1118 = vadd.f32 %v1112, %v1116
    %v1119 = vadd.f32 %v1113, %v1117
    %s1120 = sld [smem:[#allocation3 + $0x5d]]
    %v1121 = vstv %s1120
    %v1122 = vmul.f32 %v1121, %v251
    %v1123 = vmul.f32 %v1121, %v252
    %v1124 = vadd.f32 %v1118, %v1122
    %v1125 = vadd.f32 %v1119, %v1123
    %s1126 = sld [smem:[#allocation3 + $0x2d]]
    %v1127 = vstv %s1126
    %v1128 = vmul.f32 %v1127, %v141
    %v1129 = vmul.f32 %v1127, %v142
    %v1130 = vmul.f32 %v1127, %v143
    %v1131 = vmul.f32 %v1127, %v144
    %v1136 = vsel %vm150, %v1130, %v1128
    %v1137 = vsel %vm150, %v1131, %v1129
    %v1140 = vadd.f32 %v1124, %v1136
    %v1141 = vadd.f32 %v1125, %v1137
    %s1142 = sld [smem:[#allocation3 + $0x5e]]
    %v1143 = vstv %s1142
    %v1144 = vmul.f32 %v1143, %v119
    %v1145 = vmul.f32 %v1143, %v126
    %v1146 = vmul.f32 %v1143, %v133
    %v1147 = vmul.f32 %v1143, %v140
    %v1152 = vsel %vm150, %v1146, %v1144
    %v1153 = vsel %vm150, %v1147, %v1145
    %v1156 = vadd.f32 %v1140, %v1152
    %v1157 = vadd.f32 %v1141, %v1153
    %s1158 = sld [smem:[#allocation3 + $0x2e]]
    %v1159 = vstv %s1158
    %v1160 = vmul.f32 %v1159, %v273
    %v1161 = vmul.f32 %v1159, %v274
    %v1162 = vadd.f32 %v1156, %v1160
    %v1163 = vadd.f32 %v1157, %v1161
    %s1164 = sld [smem:[#allocation3 + $0x5f]]
    %v1165 = vstv %s1164
    %v1166 = vmul.f32 %v1165, %v281
    %v1167 = vmul.f32 %v1165, %v282
    %v1168 = vadd.f32 %v1162, %v1166
    %v1169 = vadd.f32 %v1163, %v1167
    %s1170 = sld [smem:[#allocation3 + $0x2f]]
    %v1171 = vstv %s1170
    %v1172 = vmul.f32 %v1171, %v303
    %v1173 = vmul.f32 %v1171, %v304
    %v1174 = vadd.f32 %v1168, %v1172
    %v1175 = vadd.f32 %v1169, %v1173
    %s1176 = sld [smem:[#allocation3 + $0x60]]
    %v1177 = vstv %s1176
    %v1178 = vmul.f32 %v1177, %v311
    %v1179 = vmul.f32 %v1177, %v312
    %v1180 = vadd.f32 %v1174, %v1178
    %v1181 = vadd.f32 %v1175, %v1179
    %s1182 = sld [smem:[#allocation3 + $0x30]]
    %v1183 = vstv %s1182
    %v1184 = vmul.f32 %v1183, %v333
    %v1185 = vmul.f32 %v1183, %v334
    %v1186 = vadd.f32 %v1180, %v1184
    %v1187 = vadd.f32 %v1181, %v1185
    %s1188 = sld [smem:[#allocation3 + $0x61]]
    %v1189 = vstv %s1188
    %v1190 = vmul.f32 %v1189, %v341
    %v1191 = vmul.f32 %v1189, %v342
    %v1192 = vadd.f32 %v1186, %v1190
    %v1193 = vadd.f32 %v1187, %v1191
    %s1194 = scalar_lea.vmem [#allocation8], 6
    %v1195 = vld [vmem:[%s1194] ss:$8 sm:$0x3]
    %1196 = vrot.lane.b32.xlu0 %v1192, 80
    %v1197 = vpop.permute.xlu0 %1196
    %1198 = vrot.lane.b32.xlu0 %v1193, 80
    %v1199 = vpop.permute.xlu0 %1198
    %vm1200 = vcmp.lt.s32.totalorder %v160, 80
    %v1201 = vsel %vm1200, %v1197, %v1199
    %v1202 = vsel %vm1200, %v1199, %v1197
    %v1204 = vlaneseq
    %v1205 = vshrl.u32 %v1204, 7
    %v1206 = vsub.s32 0, %v1205
    %v1207 = vrot.slane %v1195, %v1206
    %v1208 = vlaneseq
    %v1209 = vshrl.u32 %v1208, 7
    %v1210 = vsub.s32 1, %v1209
    %v1211 = vrot.slane %v1195, %v1210
    %v1214 = vmul.f32 %v1201, %v1207
    %v1215 = vmul.f32 %v1202, %v1211
    %v1216 = vadd.f32 %v1088, %v1214
    %v1217 = vadd.f32 %v1089, %v1215
    %v1218 = vxor.u32 %v1216, 2147483648
    %v1219 = vxor.u32 %v1217, 2147483648
    %v1220 = vmul.f32 %v1218, 1.442695
    %v1221 = vpow.pop %v1220
    %v1222 = vmul.f32 %v1219, 1.442695
    %v1223 = vpow.pop %v1222
    %v1224 = vadd.f32 %v1221, 1.0
    %v1225 = vadd.f32 %v1223, 1.0
    %v1226 = vrcp.pop %v1224
    %v1227 = vmul.f32 1.0, %v1226
    %v1228 = vrcp.pop %v1225
    %v1229 = vmul.f32 1.0, %v1228
    %v1232 = vcombine.low %v1227, %v1229
    %v1234 = vunpack.c.l.s4 1966171168
    %v1235 = vunpack.c.0.s8 %v1234
    %v1236 = vlaneseq
    %v1237 = vshrl.u32 %v1236, 7
    %v1238 = vsub.s32 %v1235, %v1237
    %v1239 = vrot.slane %v1232, %v1238
    %v1240 = vcombine.high %v1239, %v1239
    %v1242 = vunpack.c.l.s4 1966171168
    %v1243 = vunpack.c.0.s8 %v1242
    %v1244 = vlaneseq
    %v1245 = vshrl.u32 %v1244, 7
    %v1246 = vsub.s32 %v1243, %v1245
    %v1247 = vrot.slane %v1239, %v1246
    %v1249 = vunpack.c.l.s4 1966171168
    %v1250 = vunpack.c.0.s8 %v1249
    %v1251 = vlaneseq
    %v1252 = vshrl.u32 %v1251, 7
    %v1253 = vsub.s32 %v1250, %v1252
    %v1254 = vrot.slane %v1240, %v1253
    %v1255 = vlaneseq
    %v1256 = vshrl.u32 %v1255, 7
    %v1257 = vsub.s32 0, %v1256
    %v1258 = vrot.slane %v1247, %v1257
    %v1259 = vlaneseq
    %v1260 = vshrl.u32 %v1259, 7
    %v1261 = vsub.s32 1, %v1260
    %v1262 = vrot.slane %v1247, %v1261
    %v1263 = vlaneseq
    %v1264 = vshrl.u32 %v1263, 7
    %v1265 = vsub.s32 0, %v1264
    %v1266 = vrot.slane %v1254, %v1265
    %v1267 = vlaneseq
    %v1268 = vshrl.u32 %v1267, 7
    %v1269 = vsub.s32 1, %v1268
    %v1270 = vrot.slane %v1254, %v1269
    %v1271 = vcombine.low %v1258, %v1262
    %v1272 = vcombine.low %v1266, %v1270
    %v1275 = vmul.f32 %v72, %v1271
    %v1276 = vmul.f32 %v73, %v1272
    %1277 = vst [vmem:[#allocation11] sm:$0xff] %v1275
    %1278 = vst [vmem:[#allocation11 + $0x8] sm:$0xff] %v1276
    // Predicated region
    $region38: #{tpu_custom_call.1} parent=1 // pred_check
      _
    $region39: #{tpu_custom_call.1} parent=1 // pred_check_branch
      %1280 = sbr.rel (0) target = $region41
    $region40: #{tpu_custom_call.1} parent=1 // pred_region
      %s1282 = ssub.s32 256, 256
      %1283 = vsyncadd [#allocation5], %s1282
      %s1284 = sshll.u32 [#allocation11], 4
      %s1285 = int_to_ptr.vmem [resolvable:$true] %s1284
      %1290 = dma.vmem_to_hbm [thread:$0]  %s1285, 256, %s5, [#allocation5], 128, 128, 8
    $region41: #{tpu_custom_call.1} parent=1 // pred_fallthru
      _
    // Predicated region
    $region42: #{tpu_custom_call.1} parent=1 // pred_check
      _
    $region43: #{tpu_custom_call.1} parent=1 // pred_check_branch
      %1292 = sbr.rel (0) target = $region45
    $region44: #{tpu_custom_call.1} parent=1 // pred_region
      %1293 = dma.done [#allocation5], 256
    $region45: #{tpu_custom_call.1} parent=1 // pred_fallthru
      _
    %1294 = vsyncpa [#allocation4], 1
    %1295 = vsyncpa [#allocation9], 1
    %1296 = vsyncpa [#allocation5], 1
    %1297 = vsyncpa [#allocation6], 1

</llo_original>
